<compile_context>
chip_gen: v6e
topology: v6e:2x2x1
jax: 0.10.0
libtpu: 0.0.40
codegen_flags: <defaults>
</compile_context>

<pallas_src>
import math
from functools import partial

import jax
import jax.numpy as jnp
from jax.experimental import pallas as pl
from jax.experimental.pallas import tpu as pltpu


def sdpa_kernel(q_ref, k_ref, v_ref, ctx_ref, attn_ref, *, scale):
    # Block views: q/k -> [TB, H, Dk], v -> [TB, H, Dv]; native dtype (no upcast).
    q = q_ref[...]
    k = k_ref[...]
    v = v_ref[...]

    # scores = Q @ K^T / sqrt(d_k)  -> [TB, H, H]  (batched MXU matmul, f32 accum)
    scores = jnp.einsum("bqd,bkd->bqk", q, k,
                        preferred_element_type=jnp.float32) * scale

    # Numerically-stable softmax over the last axis (f32 statistics).
    m = jnp.max(scores, axis=-1, keepdims=True)
    p = jnp.exp(scores - m)
    denom = jnp.sum(p, axis=-1, keepdims=True)
    # approx=True lowers to the EUP vrcp slot (otherwise idle in this kernel).
    attn = p * pl.reciprocal(denom, approx=True)

    # TODO(synk): dropout(attn) is identity (eval-mode semantics).

    # context = attn @ V -> [TB, H, Dv]; attn cast back to V's dtype for the MXU.
    ctx = jnp.einsum("bqk,bkd->bqd", attn.astype(v.dtype), v,
                     preferred_element_type=jnp.float32)

    ctx_ref[...] = ctx.astype(ctx_ref.dtype)
    attn_ref[...] = attn.astype(attn_ref.dtype)


def scaled_dot_product_attention(q, k, v, *, d_k=None, block_b=256):
    """Pallas forward of ScaledDotProductAttention. Returns (context, attn)."""
    B, H, Dk = q.shape
    Dv = v.shape[-1]
    if d_k is None:
        d_k = Dk
    scale = 1.0 / math.sqrt(d_k)

    # ---- batch tile selection -------------------------------------------
    tb = min(block_b, B)
    if B > 1 and pl.cdiv(B, tb) < 2:
        # Keep >=2 grid steps: enables double-buffer pipelining and lets the
        # ("parallel",) batch axis split across v7x's two TensorCores.
        tb = pl.cdiv(B, 2)
    grid = (pl.cdiv(B, tb),)
    # Partial last blocks are safe: softmax/matmuls are row-independent and
    # padded rows are discarded on writeback.

    itemsize = lambda a: jnp.dtype(a.dtype).itemsize
    attn_dtype = q.dtype

    # Per-step VMEM working set (q, k, v, ctx, attn tiles), double-buffered.
    tile_bytes = (tb * H * Dk * (itemsize(q) + itemsize(k))
                  + tb * H * Dv * (itemsize(v) + itemsize(q))
                  + tb * H * H * jnp.dtype(attn_dtype).itemsize)
    vmem_limit = int(min(64 << 20, max(32 << 20, 2 * tile_bytes + (4 << 20))))

    # Advisory cost estimate with real element sizes (kernel is HBM-bound).
    flops = 2 * B * H * H * (Dk + Dv)
    transcendentals = B * H * H  # exp; reciprocals are negligible
    bytes_accessed = (B * H * Dk * (itemsize(q) + itemsize(k))
                      + B * H * Dv * (itemsize(v) + itemsize(q))
                      + B * H * H * jnp.dtype(attn_dtype).itemsize)

    ctx, attn = pl.pallas_call(
        partial(sdpa_kernel, scale=scale),
        out_shape=(jax.ShapeDtypeStruct((B, H, Dv), q.dtype),
                   jax.ShapeDtypeStruct((B, H, H), attn_dtype)),
        grid=grid,
        in_specs=[pl.BlockSpec((tb, H, Dk), lambda i: (i, 0, 0)),
                  pl.BlockSpec((tb, H, Dk), lambda i: (i, 0, 0)),
                  pl.BlockSpec((tb, H, Dv), lambda i: (i, 0, 0))],
        out_specs=(pl.BlockSpec((tb, H, Dv), lambda i: (i, 0, 0)),
                   pl.BlockSpec((tb, H, H), lambda i: (i, 0, 0))),
        compiler_params=pltpu.CompilerParams(
            dimension_semantics=("parallel",),
            vmem_limit_bytes=vmem_limit),
        cost_estimate=pl.CostEstimate(flops=flops,
                                      transcendentals=transcendentals,
                                      bytes_accessed=bytes_accessed),
    )(q, k, v)
    return ctx, attn


def reference_sdpa(q, k, v, d_k):
    """Pure-JAX reference with identical math, for correctness checking."""
    scores = jnp.einsum("bqd,bkd->bqk",
                        q.astype(jnp.float32), k.astype(jnp.float32)) / math.sqrt(d_k)
    attn = jax.nn.softmax(scores, axis=-1)
    ctx = jnp.einsum("bqk,bkd->bqd", attn, v.astype(jnp.float32))
    return ctx, attn


if __name__ == "__main__":
    # Small shapes consistent with the module docstring:
    #   Q, K: [batch, n_heads, d_k], V: [batch, n_heads, d_v]
    # d_k = d_v = 128 keeps the context output lane-dense (full-width stores).
    B, H, Dk, Dv = 32, 8, 128, 128

    key = jax.random.PRNGKey(0)
    kq, kk, kv = jax.random.split(key, 3)
    q = jax.random.normal(kq, (B, H, Dk), jnp.float32)
    k = jax.random.normal(kk, (B, H, Dk), jnp.float32)
    v = jax.random.normal(kv, (B, H, Dv), jnp.float32)

    ctx, attn = scaled_dot_product_attention(q, k, v, d_k=Dk)
    ctx = jax.block_until_ready(ctx)
    attn = jax.block_until_ready(attn)

    ref_ctx, ref_attn = reference_sdpa(q, k, v, Dk)
    assert ctx.shape == (B, H, Dv)
    assert attn.shape == (B, H, H)
    # approx=True reciprocal (~12-bit EUP) -> slightly looser tolerances.
    assert jnp.allclose(attn, ref_attn, atol=2e-3, rtol=2e-3), "attn mismatch vs reference"
    assert jnp.allclose(ctx, ref_ctx, atol=5e-3, rtol=5e-3), "context mismatch vs reference"

    print("KERNEL_OK")
</pallas_src>

<mosaic_0001>
module attributes {stable_mosaic.version = 11 : i64} {
  func.func @sdpa_kernel(%arg0: i32, %arg1: memref<16x8x128xf32, #tpu.memory_space<vmem>>, %arg2: memref<16x8x128xf32, #tpu.memory_space<vmem>>, %arg3: memref<16x8x128xf32, #tpu.memory_space<vmem>>, %arg4: memref<16x8x128xf32, #tpu.memory_space<vmem>>, %arg5: memref<16x8x8xf32, #tpu.memory_space<vmem>>) attributes {dimension_semantics = [#tpu.dimension_semantics<parallel>], iteration_bounds = array<i64: 2>, scalar_prefetch = 0 : i64, scratch_operands = 0 : i64, tpu.core_type = #tpu.core_type<tc>, window_params = [{transform_indices = @transform_0, window_bounds = array<i64: 16, 8, 128>}, {transform_indices = @transform_1, window_bounds = array<i64: 16, 8, 128>}, {transform_indices = @transform_2, window_bounds = array<i64: 16, 8, 128>}, {transform_indices = @transform_3, window_bounds = array<i64: 16, 8, 128>}, {transform_indices = @transform_4, window_bounds = array<i64: 16, 8, 8>}]} {
    %c0 = arith.constant 0 : index
    %c0_0 = arith.constant 0 : index
    %c0_1 = arith.constant 0 : index
    %0 = vector.load %arg1[%c0, %c0_0, %c0_1] : memref<16x8x128xf32, #tpu.memory_space<vmem>>, vector<16x8x128xf32>
    %c0_2 = arith.constant 0 : index
    %c0_3 = arith.constant 0 : index
    %c0_4 = arith.constant 0 : index
    %1 = vector.load %arg2[%c0_2, %c0_3, %c0_4] : memref<16x8x128xf32, #tpu.memory_space<vmem>>, vector<16x8x128xf32>
    %c0_5 = arith.constant 0 : index
    %c0_6 = arith.constant 0 : index
    %c0_7 = arith.constant 0 : index
    %2 = vector.load %arg3[%c0_5, %c0_6, %c0_7] : memref<16x8x128xf32, #tpu.memory_space<vmem>>, vector<16x8x128xf32>
    "tpu.trace_start"() <{level = 10 : i32, message = "bqd,bkd->bqk"}> : () -> ()
    %cst = arith.constant dense<0.000000e+00> : vector<16x8x8xf32>
    %3 = tpu.matmul %0, %1, %cst {dimension_numbers = #tpu.dot_dimension_numbers<[2], [2], [1], [1], [0, 0, 0, 1, 1, 1], [0], [0]>} : vector<16x8x128xf32>, vector<16x8x128xf32>, vector<16x8x8xf32> -> vector<16x8x8xf32>
    "tpu.trace_stop"() : () -> ()
    %cst_8 = arith.constant 0.0883883461 : f32
    %4 = vector.broadcast %cst_8 : f32 to vector<16x8x8xf32>
    %5 = arith.mulf %3, %4 : vector<16x8x8xf32>
    %cst_9 = arith.constant dense<0xFF800000> : vector<16x8xf32>
    %6 = vector.multi_reduction <maximumf>, %5, %cst_9 [2] : vector<16x8x8xf32> to vector<16x8xf32>
    %7 = vector.shape_cast %6 : vector<16x8xf32> to vector<16x8x1xf32>
    %8 = vector.broadcast %7 : vector<16x8x1xf32> to vector<16x8x8xf32>
    %9 = arith.subf %5, %8 : vector<16x8x8xf32>
    %10 = math.exp %9 : vector<16x8x8xf32>
    %cst_10 = arith.constant dense<0.000000e+00> : vector<16x8xf32>
    %11 = vector.multi_reduction <add>, %10, %cst_10 [2] : vector<16x8x8xf32> to vector<16x8xf32>
    %12 = vector.shape_cast %11 : vector<16x8xf32> to vector<16x8x1xf32>
    %13 = tpu.reciprocal %12 {approx = true} : vector<16x8x1xf32> -> vector<16x8x1xf32>
    %14 = vector.broadcast %13 : vector<16x8x1xf32> to vector<16x8x8xf32>
    %15 = arith.mulf %10, %14 : vector<16x8x8xf32>
    "tpu.trace_start"() <{level = 10 : i32, message = "bqk,bkd->bqd"}> : () -> ()
    %cst_11 = arith.constant dense<0.000000e+00> : vector<16x8x128xf32>
    %16 = tpu.matmul %15, %2, %cst_11 {dimension_numbers = #tpu.dot_dimension_numbers<[2], [1], [1], [2], [0, 0, 0, 1, 1, 2], [0], [0]>} : vector<16x8x8xf32>, vector<16x8x128xf32>, vector<16x8x128xf32> -> vector<16x8x128xf32>
    "tpu.trace_stop"() : () -> ()
    %c0_12 = arith.constant 0 : index
    %c0_13 = arith.constant 0 : index
    %c0_14 = arith.constant 0 : index
    %17 = vector.load %arg4[%c0_12, %c0_13, %c0_14] : memref<16x8x128xf32, #tpu.memory_space<vmem>>, vector<16x8x128xf32>
    tpu.vector_store %arg4[%c0_12, %c0_13, %c0_14], %16 {strides = array<i32>} : memref<16x8x128xf32, #tpu.memory_space<vmem>>, vector<16x8x128xf32>,
    %c0_15 = arith.constant 0 : index
    %c0_16 = arith.constant 0 : index
    %c0_17 = arith.constant 0 : index
    %18 = vector.load %arg5[%c0_15, %c0_16, %c0_17] : memref<16x8x8xf32, #tpu.memory_space<vmem>>, vector<16x8x8xf32>
    tpu.vector_store %arg5[%c0_15, %c0_16, %c0_17], %15 {strides = array<i32>} : memref<16x8x8xf32, #tpu.memory_space<vmem>>, vector<16x8x8xf32>,
    return
  }
  func.func @transform_0(%arg0: i32) -> (i32, i32, i32) {
    %c0_i32 = arith.constant 0 : i32
    %c0_i32_0 = arith.constant 0 : i32
    %c0_i32_1 = arith.constant 0 : i32
    return %arg0, %c0_i32, %c0_i32_0 : i32, i32, i32
  }
  func.func @transform_1(%arg0: i32) -> (i32, i32, i32) {
    %c0_i32 = arith.constant 0 : i32
    %c0_i32_0 = arith.constant 0 : i32
    %c0_i32_1 = arith.constant 0 : i32
    return %arg0, %c0_i32, %c0_i32_0 : i32, i32, i32
  }
  func.func @transform_2(%arg0: i32) -> (i32, i32, i32) {
    %c0_i32 = arith.constant 0 : i32
    %c0_i32_0 = arith.constant 0 : i32
    %c0_i32_1 = arith.constant 0 : i32
    return %arg0, %c0_i32, %c0_i32_0 : i32, i32, i32
  }
  func.func @transform_3(%arg0: i32) -> (i32, i32, i32) {
    %c0_i32 = arith.constant 0 : i32
    %c0_i32_0 = arith.constant 0 : i32
    %c0_i32_1 = arith.constant 0 : i32
    return %arg0, %c0_i32, %c0_i32_0 : i32, i32, i32
  }
  func.func @transform_4(%arg0: i32) -> (i32, i32, i32) {
    %c0_i32 = arith.constant 0 : i32
    %c0_i32_0 = arith.constant 0 : i32
    %c0_i32_1 = arith.constant 0 : i32
    return %arg0, %c0_i32, %c0_i32_0 : i32, i32, i32
  }
}

</mosaic_0001>

<llo_original>
// kernel: tpu_custom_call.1
$region0: #{tpu_custom_call.1}
  #allocation0 [shape = 'u32[]', space=smem, size = 0x4, offset = 0x4, fixed_abs, tag = 'smem constant byte address 0x4 - core index']
  #allocation1 [shape = 'u32[144,128]{1,0:T(1,128)}', space=vmem, size = 0x12000, scoped, tag = 'internal scratch']
  %s0 = inlined_call_operand.hbm [shape: f32[32,8,128], index: 0, kind: input, shape index: {}]
  %s1 = inlined_call_operand.hbm [shape: f32[32,8,128], index: 1, kind: input, shape index: {}]
  %s2 = inlined_call_operand.hbm [shape: f32[32,8,128], index: 2, kind: input, shape index: {}]
  %s3 = inlined_call_operand.hbm [shape: f32[32,8,128], index: 3, kind: output, shape index: {0}]
  %s4 = inlined_call_operand.vmem [shape: f32[32,8,8], index: 4, kind: output, shape index: {1}]
  %5 = xla_tuple %s3, %s4
  %s6 = sld [smem:[#allocation0]]
  $region65: #{tpu_custom_call.1} parent=0
    _
  %s8 = ssub.s32 1, %s6
  %s9 = scalar_select 0, %s8, %s6
  $region1: #{tpu_custom_call.1} parent=0
    #allocation2 [shape = 'u8[131072]{0}', space=vmem, size = 0x20000, scoped, tag = 'input window, operand 0']
    #allocation3 [shape = 's32[2]{0}', space=sflag, size = 0x8, scoped, tag = 'scoped memory for tpu_custom_call.1']
    #allocation4 [shape = 's32[2]{0}', space=sflag, size = 0x8, scoped, tag = 'scoped memory for tpu_custom_call.1']
    #allocation5 [shape = 'u8[131072]{0}', space=vmem, size = 0x20000, scoped, tag = 'input window, operand 1']
    #allocation6 [shape = 's32[2]{0}', space=sflag, size = 0x8, scoped, tag = 'scoped memory for tpu_custom_call.1']
    #allocation7 [shape = 'u8[131072]{0}', space=vmem, size = 0x20000, scoped, tag = 'input window, operand 2']
    #allocation8 [shape = 'u8[131072]{0}', space=vmem, size = 0x20000, scoped, tag = 'output window, operand 0']
    %10 = vsyncpa [#allocation3], 0
    %s11 = scalar_lea.sflag [#allocation3], 1
    %12 = vsyncpa %s11, 0
    %13 = vsyncpa [#allocation6], 0
    %s14 = scalar_lea.sflag [#allocation6], 1
    %15 = vsyncpa %s14, 0
    %16 = vsyncpa [#allocation4], 0
    %s17 = scalar_lea.sflag [#allocation4], 1
    %18 = vsyncpa %s17, 0
    loop: start=0, step=1, limit=4
    $region2: #{tpu_custom_call.1} parent=1 // loop_pre_header
      _
    $region3: #{tpu_custom_call.1} parent=1 // loop_header
      %s20 = sphi 0, %s24
      %p21 = scmp.ge.s32.totalorder %s20, 4
      %s30 = sphi 0, %s32
      %s33 = sphi 0, %s30
      %s34 = sphi 0, %s33
      %s50 = sphi 0, %s34
      %s56 = sphi 0, %s58
      %s59 = sphi 0, %s56
      %s60 = sphi 0, %s59
      %s76 = sphi 0, %s60
      %s82 = sphi 0, %s84
      %s85 = sphi 0, %s82
      %s86 = sphi 0, %s85
      %s102 = sphi 0, %s86
      %s108 = sphi 0, %s110
      %s111 = sphi 0, %s108
      %s112 = sphi 0, %s111
      %s128 = sphi 0, %s112
      %s134 = sphi 0, %s136
      %s137 = sphi 0, %s134
      %s138 = sphi 0, %s137
      %s154 = sphi 0, %s138
    $region4: #{tpu_custom_call.1} parent=1 // loop_header_branch
      %23 = sbr.rel (%p21) target = $region8
    $region5: #{tpu_custom_call.1} parent=1 // loop_body
      %s25 = ssub.s32 %s20, 1
      %s26 = ssub.s32 %s20, 2
      %s27 = sadd.s32 %s20, 1
      %s28 = ssub.s32 %s20, %s27
      %p29 = scmp.eq.s32.totalorder %s28, 0
      %s31 = sadd.s32 %s30, 1
      %s32 = scalar_select %p29, %s30, %s31
      %p35 = pneg %p29
      %p36 = scmp.eq.s32.totalorder %s20, 1
      %p37 = por %p35, %p36
      %p38 = scmp.ne.s32.totalorder %s30, %s33
      %p39 = scmp.eq.s32.totalorder %s20, 0
      %p40 = por %p38, %p39
      %p41 = scmp.ne.s32.totalorder %s30, %s33
      %p42 = scmp.eq.s32.totalorder %s25, 1
      %p43 = por %p41, %p42
      %p44 = scmp.ne.s32.totalorder %s33, %s34
      %p45 = scmp.eq.s32.totalorder %s25, 0
      %p46 = por %p44, %p45
      %p47 = scmp.ne.s32.totalorder %s33, %s34
      %p48 = scmp.eq.s32.totalorder %s26, 1
      %p49 = por %p47, %p48
      %p51 = scmp.ne.s32.totalorder %s34, %s50
      %p52 = scmp.eq.s32.totalorder %s26, 0
      %p53 = por %p51, %p52
      %s54 = ssub.s32 %s20, %s27
      %p55 = scmp.eq.s32.totalorder %s54, 0
      %s57 = sadd.s32 %s56, 1
      %s58 = scalar_select %p55, %s56, %s57
      %p61 = pneg %p55
      %p62 = scmp.eq.s32.totalorder %s20, 1
      %p63 = por %p61, %p62
      %p64 = scmp.ne.s32.totalorder %s56, %s59
      %p65 = scmp.eq.s32.totalorder %s20, 0
      %p66 = por %p64, %p65
      %p67 = scmp.ne.s32.totalorder %s56, %s59
      %p68 = scmp.eq.s32.totalorder %s25, 1
      %p69 = por %p67, %p68
      %p70 = scmp.ne.s32.totalorder %s59, %s60
      %p71 = scmp.eq.s32.totalorder %s25, 0
      %p72 = por %p70, %p71
      %p73 = scmp.ne.s32.totalorder %s59, %s60
      %p74 = scmp.eq.s32.totalorder %s26, 1
      %p75 = por %p73, %p74
      %p77 = scmp.ne.s32.totalorder %s60, %s76
      %p78 = scmp.eq.s32.totalorder %s26, 0
      %p79 = por %p77, %p78
      %s80 = ssub.s32 %s20, %s27
      %p81 = scmp.eq.s32.totalorder %s80, 0
      %s83 = sadd.s32 %s82, 1
      %s84 = scalar_select %p81, %s82, %s83
      %p87 = pneg %p81
      %p88 = scmp.eq.s32.totalorder %s20, 1
      %p89 = por %p87, %p88
      %p90 = scmp.ne.s32.totalorder %s82, %s85
      %p91 = scmp.eq.s32.totalorder %s20, 0
      %p92 = por %p90, %p91
      %p93 = scmp.ne.s32.totalorder %s82, %s85
      %p94 = scmp.eq.s32.totalorder %s25, 1
      %p95 = por %p93, %p94
      %p96 = scmp.ne.s32.totalorder %s85, %s86
      %p97 = scmp.eq.s32.totalorder %s25, 0
      %p98 = por %p96, %p97
      %p99 = scmp.ne.s32.totalorder %s85, %s86
      %p100 = scmp.eq.s32.totalorder %s26, 1
      %p101 = por %p99, %p100
      %p103 = scmp.ne.s32.totalorder %s86, %s102
      %p104 = scmp.eq.s32.totalorder %s26, 0
      %p105 = por %p103, %p104
      %s106 = ssub.s32 %s20, %s27
      %p107 = scmp.eq.s32.totalorder %s106, 0
      %s109 = sadd.s32 %s108, 1
      %s110 = scalar_select %p107, %s108, %s109
      %p113 = pneg %p107
      %p114 = scmp.eq.s32.totalorder %s20, 1
      %p115 = por %p113, %p114
      %p116 = scmp.ne.s32.totalorder %s108, %s111
      %p117 = scmp.eq.s32.totalorder %s20, 0
      %p118 = por %p116, %p117
      %p119 = scmp.ne.s32.totalorder %s108, %s111
      %p120 = scmp.eq.s32.totalorder %s25, 1
      %p121 = por %p119, %p120
      %p122 = scmp.ne.s32.totalorder %s111, %s112
      %p123 = scmp.eq.s32.totalorder %s25, 0
      %p124 = por %p122, %p123
      %p125 = scmp.ne.s32.totalorder %s111, %s112
      %p126 = scmp.eq.s32.totalorder %s26, 1
      %p127 = por %p125, %p126
      %p129 = scmp.ne.s32.totalorder %s112, %s128
      %p130 = scmp.eq.s32.totalorder %s26, 0
      %p131 = por %p129, %p130
      %s132 = ssub.s32 %s20, %s27
      %p133 = scmp.eq.s32.totalorder %s132, 0
      %s135 = sadd.s32 %s134, 1
      %s136 = scalar_select %p133, %s134, %s135
      %p139 = pneg %p133
      %p140 = scmp.eq.s32.totalorder %s20, 1
      %p141 = por %p139, %p140
      %p142 = scmp.ne.s32.totalorder %s134, %s137
      %p143 = scmp.eq.s32.totalorder %s20, 0
      %p144 = por %p142, %p143
      %p145 = scmp.ne.s32.totalorder %s134, %s137
      %p146 = scmp.eq.s32.totalorder %s25, 1
      %p147 = por %p145, %p146
      %p148 = scmp.ne.s32.totalorder %s137, %s138
      %p149 = scmp.eq.s32.totalorder %s25, 0
      %p150 = por %p148, %p149
      %p151 = scmp.ne.s32.totalorder %s137, %s138
      %p152 = scmp.eq.s32.totalorder %s26, 1
      %p153 = por %p151, %p152
      %p155 = scmp.ne.s32.totalorder %s138, %s154
      %p156 = scmp.eq.s32.totalorder %s26, 0
      %p157 = por %p155, %p156
      %p158 = scmp.le.s32.totalorder 1, %s20
      %p159 = scmp.lt.s32.totalorder %s20, 3
      %p160 = pnand %p158, %p159
      %p161 = pneg %p160
      // Predicated region
      $region9: #{tpu_custom_call.1} parent=5 // pred_check
        _
      $region10: #{tpu_custom_call.1} parent=5 // pred_check_branch
        %163 = sbr.rel (%p160) target = $region12
      $region11: #{tpu_custom_call.1} parent=5 // pred_region
        %s164 = ssub.s32 %s20, 1
      $region12: #{tpu_custom_call.1} parent=5 // pred_fallthru
        _
      %p165 = scmp.lt.s32.totalorder %s20, 2
      // Predicated region
      $region13: #{tpu_custom_call.1} parent=5 // pred_check
        %p166 = pneg %p165
      $region14: #{tpu_custom_call.1} parent=5 // pred_check_branch
        %168 = sbr.rel (%p166) target = $region16
      $region15: #{tpu_custom_call.1} parent=5 // pred_region
        // Predicated region
        $region17: #{tpu_custom_call.1} parent=15 // pred_check
          %p169 = pneg %p40
        $region18: #{tpu_custom_call.1} parent=15 // pred_check_branch
          %171 = sbr.rel (%p169) target = $region20
        $region19: #{tpu_custom_call.1} parent=15 // pred_region
          %s172 = sand.u32 %s30, 1
          %s173 = scalar_lea.sflag [#allocation3], %s172
          %s174 = sand.u32 %s30, 1
          %s175 = smul.addr %s174, 128
          %s176 = scalar_lea.vmem [#allocation2], %s175
          %s177 = smul.u32 16, %s20
          %s179 = ssub.s32 2048, 2048
          %180 = vsyncadd %s173, %s179
          %s181 = smul.addr %s177, 128
          %s182 = scalar_lea.hbm %s0, %s181
          %s183 = sshll.u32 %s176, 4
          %s184 = int_to_ptr.vmem [resolvable:$true] %s183
          %189 = dma.hbm_to_vmem [thread:$0]  %s182, 2048, %s184, %s173, 128, 128, 8
        $region20: #{tpu_custom_call.1} parent=15 // pred_fallthru
          _
        // Predicated region
        $region21: #{tpu_custom_call.1} parent=15 // pred_check
          %p190 = pneg %p66
        $region22: #{tpu_custom_call.1} parent=15 // pred_check_branch
          %192 = sbr.rel (%p190) target = $region24
        $region23: #{tpu_custom_call.1} parent=15 // pred_region
          %s193 = sand.u32 %s20, 1
          %s194 = scalar_lea.sflag [#allocation6], %s193
          %s195 = sand.u32 %s56, 1
          %s196 = smul.addr %s195, 128
          %s197 = scalar_lea.vmem [#allocation5], %s196
          %s198 = smul.u32 16, %s20
          %s200 = ssub.s32 2048, 2048
          %201 = vsyncadd %s194, %s200
          %s202 = smul.addr %s198, 128
          %s203 = scalar_lea.hbm %s1, %s202
          %s204 = sshll.u32 %s197, 4
          %s205 = int_to_ptr.vmem [resolvable:$true] %s204
          %210 = dma.hbm_to_vmem [thread:$0]  %s203, 2048, %s205, %s194, 128, 128, 8
        $region24: #{tpu_custom_call.1} parent=15 // pred_fallthru
          _
        // Predicated region
        $region25: #{tpu_custom_call.1} parent=15 // pred_check
          %p211 = pneg %p92
        $region26: #{tpu_custom_call.1} parent=15 // pred_check_branch
          %213 = sbr.rel (%p211) target = $region28
        $region27: #{tpu_custom_call.1} parent=15 // pred_region
          %s214 = sand.u32 %s20, 1
          %s215 = scalar_lea.sflag [#allocation6], %s214
          %s216 = sand.u32 %s82, 1
          %s217 = smul.addr %s216, 128
          %s218 = scalar_lea.vmem [#allocation7], %s217
          %s219 = smul.u32 16, %s20
          %s221 = ssub.s32 2048, 2048
          %222 = vsyncadd %s215, %s221
          %s223 = smul.addr %s219, 128
          %s224 = scalar_lea.hbm %s2, %s223
          %s225 = sshll.u32 %s218, 4
          %s226 = int_to_ptr.vmem [resolvable:$true] %s225
          %231 = dma.hbm_to_vmem [thread:$0]  %s224, 2048, %s226, %s215, 128, 128, 8
        $region28: #{tpu_custom_call.1} parent=15 // pred_fallthru
          _
      $region16: #{tpu_custom_call.1} parent=5 // pred_fallthru
        _
      %p232 = scmp.le.s32.totalorder 1, %s20
      %p233 = scmp.lt.s32.totalorder %s20, 3
      %p234 = pnand %p232, %p233
      %p235 = pneg %p234
      // Predicated region
      $region29: #{tpu_custom_call.1} parent=5 // pred_check
        _
      $region30: #{tpu_custom_call.1} parent=5 // pred_check_branch
        %237 = sbr.rel (%p234) target = $region32
      $region31: #{tpu_custom_call.1} parent=5 // pred_region
        %s238 = ssub.s32 %s20, 1
        %s239 = sand.u32 %s33, 1
        %s240 = scalar_lea.sflag [#allocation3], %s239
        %s241 = sand.u32 %s33, 1
        %s242 = smul.addr %s241, 128
        %s243 = scalar_lea.vmem [#allocation2], %s242
        // Predicated region
        $region33: #{tpu_custom_call.1} parent=31 // pred_check
          %p244 = pneg %p46
        $region34: #{tpu_custom_call.1} parent=31 // pred_check_branch
          %246 = sbr.rel (%p244) target = $region36
        $region35: #{tpu_custom_call.1} parent=31 // pred_region
          %247 = dma.done %s240, 2048
        $region36: #{tpu_custom_call.1} parent=31 // pred_fallthru
          _
        %s248 = sand.u32 %s25, 1
        %s249 = scalar_lea.sflag [#allocation6], %s248
        %s250 = sand.u32 %s59, 1
        %s251 = smul.addr %s250, 128
        %s252 = scalar_lea.vmem [#allocation5], %s251
        // Predicated region
        $region37: #{tpu_custom_call.1} parent=31 // pred_check
          %p253 = pneg %p72
        $region38: #{tpu_custom_call.1} parent=31 // pred_check_branch
          %255 = sbr.rel (%p253) target = $region40
        $region39: #{tpu_custom_call.1} parent=31 // pred_region
          %256 = dma.done %s249, 2048
        $region40: #{tpu_custom_call.1} parent=31 // pred_fallthru
          _
        %s257 = sand.u32 %s25, 1
        %s258 = scalar_lea.sflag [#allocation6], %s257
        %s259 = sand.u32 %s85, 1
        %s260 = smul.addr %s259, 128
        %s261 = scalar_lea.vmem [#allocation7], %s260
        // Predicated region
        $region41: #{tpu_custom_call.1} parent=31 // pred_check
          %p262 = pneg %p98
        $region42: #{tpu_custom_call.1} parent=31 // pred_check_branch
          %264 = sbr.rel (%p262) target = $region44
        $region43: #{tpu_custom_call.1} parent=31 // pred_region
          %265 = dma.done %s258, 2048
        $region44: #{tpu_custom_call.1} parent=31 // pred_fallthru
          _
        %s266 = sand.u32 %s33, 1
        %s267 = scalar_lea.sflag [#allocation3], %s266
        %s268 = sand.u32 %s33, 1
        %s269 = smul.addr %s268, 128
        %s270 = scalar_lea.vmem [#allocation2], %s269
        %p271 = pneg %p46
        %p272 = pneg %p43
        %s273 = sand.u32 %s25, 1
        %s274 = scalar_lea.sflag [#allocation6], %s273
        %s275 = sand.u32 %s59, 1
        %s276 = smul.addr %s275, 128
        %s277 = scalar_lea.vmem [#allocation5], %s276
        %p278 = pneg %p72
        %p279 = pneg %p69
        %s280 = sand.u32 %s25, 1
        %s281 = scalar_lea.sflag [#allocation6], %s280
        %s282 = sand.u32 %s85, 1
        %s283 = smul.addr %s282, 128
        %s284 = scalar_lea.vmem [#allocation7], %s283
        %p285 = pneg %p98
        %p286 = pneg %p95
        %p287 = pneg %p124
        %p288 = pneg %p121
        %s289 = sand.u32 %s111, 1
        %s290 = scalar_lea.sflag [#allocation4], %s289
        %s291 = sand.u32 %s111, 1
        %s292 = smul.addr %s291, 128
        %s293 = scalar_lea.vmem [#allocation8], %s292
        %p294 = pneg %p150
        %p295 = pneg %p147
        %s296 = smul.u32 16, %s25
        %p297 = scmp.lt.s32.totalorder %s296, 31
        %s298 = scalar_select %p297, %s296, 31
        %s299 = smul.addr %s298, 8
        %s300 = scalar_lea.vmem %s4, %s299
        %s301 = smul.u32 16, %s25
        %s302 = smul.u32 16, %s25
        %s303 = smul.u32 16, %s25
        %s304 = smul.u32 16, %s25
        %s305 = smul.u32 16, %s25
        %p306 = scmp.lt.s32.totalorder %s305, 31
        %s307 = scalar_select %p306, %s305, 31
        %s308 = smul.addr %s307, 8
        %s309 = scalar_lea.vmem %s4, %s308
        %s310 = smul.u32 16, %s25
        %v311 = vld [vmem:[%s243] sm:$0xff]
        %v312 = vld [vmem:[%s243 + $0x8] sm:$0xff]
        %v313 = vld [vmem:[%s243 + $0x10] sm:$0xff]
        %v314 = vld [vmem:[%s243 + $0x18] sm:$0xff]
        %v315 = vld [vmem:[%s243 + $0x20] sm:$0xff]
        %v316 = vld [vmem:[%s243 + $0x28] sm:$0xff]
        %v317 = vld [vmem:[%s243 + $0x30] sm:$0xff]
        %v318 = vld [vmem:[%s243 + $0x38] sm:$0xff]
        %v319 = vld [vmem:[%s243 + $0x40] sm:$0xff]
        %v320 = vld [vmem:[%s243 + $0x48] sm:$0xff]
        %v321 = vld [vmem:[%s243 + $0x50] sm:$0xff]
        %v322 = vld [vmem:[%s243 + $0x58] sm:$0xff]
        %v323 = vld [vmem:[%s243 + $0x60] sm:$0xff]
        %v324 = vld [vmem:[%s243 + $0x68] sm:$0xff]
        %v325 = vld [vmem:[%s243 + $0x70] sm:$0xff]
        %v326 = vld [vmem:[%s243 + $0x78] sm:$0xff]
        %v327 = vld [vmem:[%s252] sm:$0xff]
        %v328 = vld [vmem:[%s252 + $0x8] sm:$0xff]
        %v329 = vld [vmem:[%s252 + $0x10] sm:$0xff]
        %v330 = vld [vmem:[%s252 + $0x18] sm:$0xff]
        %v331 = vld [vmem:[%s252 + $0x20] sm:$0xff]
        %v332 = vld [vmem:[%s252 + $0x28] sm:$0xff]
        %v333 = vld [vmem:[%s252 + $0x30] sm:$0xff]
        %v334 = vld [vmem:[%s252 + $0x38] sm:$0xff]
        %v335 = vld [vmem:[%s252 + $0x40] sm:$0xff]
        %v336 = vld [vmem:[%s252 + $0x48] sm:$0xff]
        %v337 = vld [vmem:[%s252 + $0x50] sm:$0xff]
        %v338 = vld [vmem:[%s252 + $0x58] sm:$0xff]
        %v339 = vld [vmem:[%s252 + $0x60] sm:$0xff]
        %v340 = vld [vmem:[%s252 + $0x68] sm:$0xff]
        %v341 = vld [vmem:[%s252 + $0x70] sm:$0xff]
        %v342 = vld [vmem:[%s252 + $0x78] sm:$0xff]
        %v343 = vld [vmem:[%s261] sm:$0xff]
        %v344 = vld [vmem:[%s261 + $0x8] sm:$0xff]
        %v345 = vld [vmem:[%s261 + $0x10] sm:$0xff]
        %v346 = vld [vmem:[%s261 + $0x18] sm:$0xff]
        %v347 = vld [vmem:[%s261 + $0x20] sm:$0xff]
        %v348 = vld [vmem:[%s261 + $0x28] sm:$0xff]
        %v349 = vld [vmem:[%s261 + $0x30] sm:$0xff]
        %v350 = vld [vmem:[%s261 + $0x38] sm:$0xff]
        %v351 = vld [vmem:[%s261 + $0x40] sm:$0xff]
        %v352 = vld [vmem:[%s261 + $0x48] sm:$0xff]
        %v353 = vld [vmem:[%s261 + $0x50] sm:$0xff]
        %v354 = vld [vmem:[%s261 + $0x58] sm:$0xff]
        %v355 = vld [vmem:[%s261 + $0x60] sm:$0xff]
        %v356 = vld [vmem:[%s261 + $0x68] sm:$0xff]
        %v357 = vld [vmem:[%s261 + $0x70] sm:$0xff]
        %v358 = vld [vmem:[%s261 + $0x78] sm:$0xff]
        %359 = vmatprep.subr.mxu0 0.0
        %360 = vmatpush1.xpose.msra.mxu0 0.0
        %361 = vmatprep.subr.mxu0 0.0
        %362 = vmatpush1.xpose.msra.mxu0 0.0
        %363 = vmatprep.subr.mxu0 0.0
        %364 = vmatpush1.xpose.msra.mxu0 0.0
        %365 = vmatprep.subr.mxu0 0.0
        %366 = vmatpush1.xpose.msra.mxu0 0.0
        %367 = vmatprep.subr.mxu0 0.0
        %368 = vmatpush1.xpose.msra.mxu0 0.0
        %369 = vmatprep.subr.mxu0 0.0
        %370 = vmatpush1.xpose.msra.mxu0 0.0
        %371 = vmatprep.subr.mxu0 0.0
        %372 = vmatpush1.xpose.msra.mxu0 0.0
        %373 = vmatprep.subr.mxu0 0.0
        %374 = vmatpush1.xpose.msra.mxu0 0.0
        %375 = vmatprep.subr.mxu0 0.0
        %376 = vmatpush1.xpose.msra.mxu0 0.0
        %377 = vmatprep.subr.mxu0 0.0
        %378 = vmatpush1.xpose.msra.mxu0 0.0
        %379 = vmatprep.subr.mxu0 0.0
        %380 = vmatpush1.xpose.msra.mxu0 0.0
        %381 = vmatprep.subr.mxu0 0.0
        %382 = vmatpush1.xpose.msra.mxu0 0.0
        %383 = vmatprep.subr.mxu0 0.0
        %384 = vmatpush1.xpose.msra.mxu0 0.0
        %385 = vmatprep.subr.mxu0 0.0
        %386 = vmatpush1.xpose.msra.mxu0 0.0
        %387 = vmatprep.subr.mxu0 0.0
        %388 = vmatpush1.xpose.msra.mxu0 0.0
        %389 = vmatprep.subr.mxu0 0.0
        %390 = vmatpush1.xpose.msra.mxu0 %v327
        %391 = vmatprep.subr.mxu0 0.0
        %392 = vmatpush2.xpose.msra.mxu0 0.0
        %393 = vmatprep.subr.mxu0 0.0
        %394 = vmatpush2.xpose.msra.mxu0 0.0
        %395 = vmatprep.subr.mxu0 0.0
        %396 = vmatpush2.xpose.msra.mxu0 0.0
        %397 = vmatprep.subr.mxu0 0.0
        %398 = vmatpush2.xpose.msra.mxu0 0.0
        %399 = vmatprep.subr.mxu0 0.0
        %400 = vmatpush2.xpose.msra.mxu0 0.0
        %401 = vmatprep.subr.mxu0 0.0
        %402 = vmatpush2.xpose.msra.mxu0 0.0
        %403 = vmatprep.subr.mxu0 0.0
        %404 = vmatpush2.xpose.msra.mxu0 0.0
        %405 = vmatprep.subr.mxu0 0.0
        %406 = vmatpush2.xpose.msra.mxu0 0.0
        %407 = vmatprep.subr.mxu0 0.0
        %408 = vmatpush2.xpose.msra.mxu0 0.0
        %409 = vmatprep.subr.mxu0 0.0
        %410 = vmatpush2.xpose.msra.mxu0 0.0
        %411 = vmatprep.subr.mxu0 0.0
        %412 = vmatpush2.xpose.msra.mxu0 0.0
        %413 = vmatprep.subr.mxu0 0.0
        %414 = vmatpush2.xpose.msra.mxu0 0.0
        %415 = vmatprep.subr.mxu0 0.0
        %416 = vmatpush2.xpose.msra.mxu0 0.0
        %417 = vmatprep.subr.mxu0 0.0
        %418 = vmatpush2.xpose.msra.mxu0 0.0
        %419 = vmatprep.subr.mxu0 0.0
        %420 = vmatpush2.xpose.msra.mxu0 0.0
        %421 = vmatprep.subr.mxu0 0.0
        %422 = vmatpush2.xpose.msra.mxu0 0.0
        %423 = vmatprep.mubr.f32.mxu0 0.0
        %424 = vmatmul.mubr.f32.gmra.mxu0 %v311
        %v425 = vpop.f32.mrf.mxu0
        %v426 = vadd.f32 0.0, %v425
        %v427 = vpop.f32.mrf.mxu0
        %428 = vdwg.mxu0
        %429 = vmatprep.subr.mxu0 0.0
        %430 = vmatpush1.xpose.msra.mxu0 0.0
        %431 = vmatprep.subr.mxu0 0.0
        %432 = vmatpush1.xpose.msra.mxu0 0.0
        %433 = vmatprep.subr.mxu0 0.0
        %434 = vmatpush1.xpose.msra.mxu0 0.0
        %435 = vmatprep.subr.mxu0 0.0
        %436 = vmatpush1.xpose.msra.mxu0 0.0
        %437 = vmatprep.subr.mxu0 0.0
        %438 = vmatpush1.xpose.msra.mxu0 0.0
        %439 = vmatprep.subr.mxu0 0.0
        %440 = vmatpush1.xpose.msra.mxu0 0.0
        %441 = vmatprep.subr.mxu0 0.0
        %442 = vmatpush1.xpose.msra.mxu0 0.0
        %443 = vmatprep.subr.mxu0 0.0
        %444 = vmatpush1.xpose.msra.mxu0 0.0
        %445 = vmatprep.subr.mxu0 0.0
        %446 = vmatpush1.xpose.msra.mxu0 0.0
        %447 = vmatprep.subr.mxu0 0.0
        %448 = vmatpush1.xpose.msra.mxu0 0.0
        %449 = vmatprep.subr.mxu0 0.0
        %450 = vmatpush1.xpose.msra.mxu0 0.0
        %451 = vmatprep.subr.mxu0 0.0
        %452 = vmatpush1.xpose.msra.mxu0 0.0
        %453 = vmatprep.subr.mxu0 0.0
        %454 = vmatpush1.xpose.msra.mxu0 0.0
        %455 = vmatprep.subr.mxu0 0.0
        %456 = vmatpush1.xpose.msra.mxu0 0.0
        %457 = vmatprep.subr.mxu0 0.0
        %458 = vmatpush1.xpose.msra.mxu0 0.0
        %459 = vmatprep.subr.mxu0 0.0
        %460 = vmatpush1.xpose.msra.mxu0 %v328
        %461 = vmatprep.subr.mxu0 0.0
        %462 = vmatpush2.xpose.msra.mxu0 0.0
        %463 = vmatprep.subr.mxu0 0.0
        %464 = vmatpush2.xpose.msra.mxu0 0.0
        %465 = vmatprep.subr.mxu0 0.0
        %466 = vmatpush2.xpose.msra.mxu0 0.0
        %467 = vmatprep.subr.mxu0 0.0
        %468 = vmatpush2.xpose.msra.mxu0 0.0
        %469 = vmatprep.subr.mxu0 0.0
        %470 = vmatpush2.xpose.msra.mxu0 0.0
        %471 = vmatprep.subr.mxu0 0.0
        %472 = vmatpush2.xpose.msra.mxu0 0.0
        %473 = vmatprep.subr.mxu0 0.0
        %474 = vmatpush2.xpose.msra.mxu0 0.0
        %475 = vmatprep.subr.mxu0 0.0
        %476 = vmatpush2.xpose.msra.mxu0 0.0
        %477 = vmatprep.subr.mxu0 0.0
        %478 = vmatpush2.xpose.msra.mxu0 0.0
        %479 = vmatprep.subr.mxu0 0.0
        %480 = vmatpush2.xpose.msra.mxu0 0.0
        %481 = vmatprep.subr.mxu0 0.0
        %482 = vmatpush2.xpose.msra.mxu0 0.0
        %483 = vmatprep.subr.mxu0 0.0
        %484 = vmatpush2.xpose.msra.mxu0 0.0
        %485 = vmatprep.subr.mxu0 0.0
        %486 = vmatpush2.xpose.msra.mxu0 0.0
        %487 = vmatprep.subr.mxu0 0.0
        %488 = vmatpush2.xpose.msra.mxu0 0.0
        %489 = vmatprep.subr.mxu0 0.0
        %490 = vmatpush2.xpose.msra.mxu0 0.0
        %491 = vmatprep.subr.mxu0 0.0
        %492 = vmatpush2.xpose.msra.mxu0 0.0
        %493 = vmatprep.mubr.f32.mxu0 0.0
        %494 = vmatmul.mubr.f32.gmra.mxu0 %v312
        %v495 = vpop.f32.mrf.mxu0
        %v496 = vadd.f32 0.0, %v495
        %v497 = vpop.f32.mrf.mxu0
        %498 = vdwg.mxu0
        %499 = vmatprep.subr.mxu0 0.0
        %500 = vmatpush1.xpose.msra.mxu0 0.0
        %501 = vmatprep.subr.mxu0 0.0
        %502 = vmatpush1.xpose.msra.mxu0 0.0
        %503 = vmatprep.subr.mxu0 0.0
        %504 = vmatpush1.xpose.msra.mxu0 0.0
        %505 = vmatprep.subr.mxu0 0.0
        %506 = vmatpush1.xpose.msra.mxu0 0.0
        %507 = vmatprep.subr.mxu0 0.0
        %508 = vmatpush1.xpose.msra.mxu0 0.0
        %509 = vmatprep.subr.mxu0 0.0
        %510 = vmatpush1.xpose.msra.mxu0 0.0
        %511 = vmatprep.subr.mxu0 0.0
        %512 = vmatpush1.xpose.msra.mxu0 0.0
        %513 = vmatprep.subr.mxu0 0.0
        %514 = vmatpush1.xpose.msra.mxu0 0.0
        %515 = vmatprep.subr.mxu0 0.0
        %516 = vmatpush1.xpose.msra.mxu0 0.0
        %517 = vmatprep.subr.mxu0 0.0
        %518 = vmatpush1.xpose.msra.mxu0 0.0
        %519 = vmatprep.subr.mxu0 0.0
        %520 = vmatpush1.xpose.msra.mxu0 0.0
        %521 = vmatprep.subr.mxu0 0.0
        %522 = vmatpush1.xpose.msra.mxu0 0.0
        %523 = vmatprep.subr.mxu0 0.0
        %524 = vmatpush1.xpose.msra.mxu0 0.0
        %525 = vmatprep.subr.mxu0 0.0
        %526 = vmatpush1.xpose.msra.mxu0 0.0
        %527 = vmatprep.subr.mxu0 0.0
        %528 = vmatpush1.xpose.msra.mxu0 0.0
        %529 = vmatprep.subr.mxu0 0.0
        %530 = vmatpush1.xpose.msra.mxu0 %v329
        %531 = vmatprep.subr.mxu0 0.0
        %532 = vmatpush2.xpose.msra.mxu0 0.0
        %533 = vmatprep.subr.mxu0 0.0
        %534 = vmatpush2.xpose.msra.mxu0 0.0
        %535 = vmatprep.subr.mxu0 0.0
        %536 = vmatpush2.xpose.msra.mxu0 0.0
        %537 = vmatprep.subr.mxu0 0.0
        %538 = vmatpush2.xpose.msra.mxu0 0.0
        %539 = vmatprep.subr.mxu0 0.0
        %540 = vmatpush2.xpose.msra.mxu0 0.0
        %541 = vmatprep.subr.mxu0 0.0
        %542 = vmatpush2.xpose.msra.mxu0 0.0
        %543 = vmatprep.subr.mxu0 0.0
        %544 = vmatpush2.xpose.msra.mxu0 0.0
        %545 = vmatprep.subr.mxu0 0.0
        %546 = vmatpush2.xpose.msra.mxu0 0.0
        %547 = vmatprep.subr.mxu0 0.0
        %548 = vmatpush2.xpose.msra.mxu0 0.0
        %549 = vmatprep.subr.mxu0 0.0
        %550 = vmatpush2.xpose.msra.mxu0 0.0
        %551 = vmatprep.subr.mxu0 0.0
        %552 = vmatpush2.xpose.msra.mxu0 0.0
        %553 = vmatprep.subr.mxu0 0.0
        %554 = vmatpush2.xpose.msra.mxu0 0.0
        %555 = vmatprep.subr.mxu0 0.0
        %556 = vmatpush2.xpose.msra.mxu0 0.0
        %557 = vmatprep.subr.mxu0 0.0
        %558 = vmatpush2.xpose.msra.mxu0 0.0
        %559 = vmatprep.subr.mxu0 0.0
        %560 = vmatpush2.xpose.msra.mxu0 0.0
        %561 = vmatprep.subr.mxu0 0.0
        %562 = vmatpush2.xpose.msra.mxu0 0.0
        %563 = vmatprep.mubr.f32.mxu0 0.0
        %564 = vmatmul.mubr.f32.gmra.mxu0 %v313
        %v565 = vpop.f32.mrf.mxu0
        %v566 = vadd.f32 0.0, %v565
        %v567 = vpop.f32.mrf.mxu0
        %568 = vdwg.mxu0
        %569 = vmatprep.subr.mxu0 0.0
        %570 = vmatpush1.xpose.msra.mxu0 0.0
        %571 = vmatprep.subr.mxu0 0.0
        %572 = vmatpush1.xpose.msra.mxu0 0.0
        %573 = vmatprep.subr.mxu0 0.0
        %574 = vmatpush1.xpose.msra.mxu0 0.0
        %575 = vmatprep.subr.mxu0 0.0
        %576 = vmatpush1.xpose.msra.mxu0 0.0
        %577 = vmatprep.subr.mxu0 0.0
        %578 = vmatpush1.xpose.msra.mxu0 0.0
        %579 = vmatprep.subr.mxu0 0.0
        %580 = vmatpush1.xpose.msra.mxu0 0.0
        %581 = vmatprep.subr.mxu0 0.0
        %582 = vmatpush1.xpose.msra.mxu0 0.0
        %583 = vmatprep.subr.mxu0 0.0
        %584 = vmatpush1.xpose.msra.mxu0 0.0
        %585 = vmatprep.subr.mxu0 0.0
        %586 = vmatpush1.xpose.msra.mxu0 0.0
        %587 = vmatprep.subr.mxu0 0.0
        %588 = vmatpush1.xpose.msra.mxu0 0.0
        %589 = vmatprep.subr.mxu0 0.0
        %590 = vmatpush1.xpose.msra.mxu0 0.0
        %591 = vmatprep.subr.mxu0 0.0
        %592 = vmatpush1.xpose.msra.mxu0 0.0
        %593 = vmatprep.subr.mxu0 0.0
        %594 = vmatpush1.xpose.msra.mxu0 0.0
        %595 = vmatprep.subr.mxu0 0.0
        %596 = vmatpush1.xpose.msra.mxu0 0.0
        %597 = vmatprep.subr.mxu0 0.0
        %598 = vmatpush1.xpose.msra.mxu0 0.0
        %599 = vmatprep.subr.mxu0 0.0
        %600 = vmatpush1.xpose.msra.mxu0 %v330
        %601 = vmatprep.subr.mxu0 0.0
        %602 = vmatpush2.xpose.msra.mxu0 0.0
        %603 = vmatprep.subr.mxu0 0.0
        %604 = vmatpush2.xpose.msra.mxu0 0.0
        %605 = vmatprep.subr.mxu0 0.0
        %606 = vmatpush2.xpose.msra.mxu0 0.0
        %607 = vmatprep.subr.mxu0 0.0
        %608 = vmatpush2.xpose.msra.mxu0 0.0
        %609 = vmatprep.subr.mxu0 0.0
        %610 = vmatpush2.xpose.msra.mxu0 0.0
        %611 = vmatprep.subr.mxu0 0.0
        %612 = vmatpush2.xpose.msra.mxu0 0.0
        %613 = vmatprep.subr.mxu0 0.0
        %614 = vmatpush2.xpose.msra.mxu0 0.0
        %615 = vmatprep.subr.mxu0 0.0
        %616 = vmatpush2.xpose.msra.mxu0 0.0
        %617 = vmatprep.subr.mxu0 0.0
        %618 = vmatpush2.xpose.msra.mxu0 0.0
        %619 = vmatprep.subr.mxu0 0.0
        %620 = vmatpush2.xpose.msra.mxu0 0.0
        %621 = vmatprep.subr.mxu0 0.0
        %622 = vmatpush2.xpose.msra.mxu0 0.0
        %623 = vmatprep.subr.mxu0 0.0
        %624 = vmatpush2.xpose.msra.mxu0 0.0
        %625 = vmatprep.subr.mxu0 0.0
        %626 = vmatpush2.xpose.msra.mxu0 0.0
        %627 = vmatprep.subr.mxu0 0.0
        %628 = vmatpush2.xpose.msra.mxu0 0.0
        %629 = vmatprep.subr.mxu0 0.0
        %630 = vmatpush2.xpose.msra.mxu0 0.0
        %631 = vmatprep.subr.mxu0 0.0
        %632 = vmatpush2.xpose.msra.mxu0 0.0
        %633 = vmatprep.mubr.f32.mxu0 0.0
        %634 = vmatmul.mubr.f32.gmra.mxu0 %v314
        %v635 = vpop.f32.mrf.mxu0
        %v636 = vadd.f32 0.0, %v635
        %v637 = vpop.f32.mrf.mxu0
        %638 = vdwg.mxu0
        %639 = vmatprep.subr.mxu0 0.0
        %640 = vmatpush1.xpose.msra.mxu0 0.0
        %641 = vmatprep.subr.mxu0 0.0
        %642 = vmatpush1.xpose.msra.mxu0 0.0
        %643 = vmatprep.subr.mxu0 0.0
        %644 = vmatpush1.xpose.msra.mxu0 0.0
        %645 = vmatprep.subr.mxu0 0.0
        %646 = vmatpush1.xpose.msra.mxu0 0.0
        %647 = vmatprep.subr.mxu0 0.0
        %648 = vmatpush1.xpose.msra.mxu0 0.0
        %649 = vmatprep.subr.mxu0 0.0
        %650 = vmatpush1.xpose.msra.mxu0 0.0
        %651 = vmatprep.subr.mxu0 0.0
        %652 = vmatpush1.xpose.msra.mxu0 0.0
        %653 = vmatprep.subr.mxu0 0.0
        %654 = vmatpush1.xpose.msra.mxu0 0.0
        %655 = vmatprep.subr.mxu0 0.0
        %656 = vmatpush1.xpose.msra.mxu0 0.0
        %657 = vmatprep.subr.mxu0 0.0
        %658 = vmatpush1.xpose.msra.mxu0 0.0
        %659 = vmatprep.subr.mxu0 0.0
        %660 = vmatpush1.xpose.msra.mxu0 0.0
        %661 = vmatprep.subr.mxu0 0.0
        %662 = vmatpush1.xpose.msra.mxu0 0.0
        %663 = vmatprep.subr.mxu0 0.0
        %664 = vmatpush1.xpose.msra.mxu0 0.0
        %665 = vmatprep.subr.mxu0 0.0
        %666 = vmatpush1.xpose.msra.mxu0 0.0
        %667 = vmatprep.subr.mxu0 0.0
        %668 = vmatpush1.xpose.msra.mxu0 0.0
        %669 = vmatprep.subr.mxu0 0.0
        %670 = vmatpush1.xpose.msra.mxu0 %v331
        %671 = vmatprep.subr.mxu0 0.0
        %672 = vmatpush2.xpose.msra.mxu0 0.0
        %673 = vmatprep.subr.mxu0 0.0
        %674 = vmatpush2.xpose.msra.mxu0 0.0
        %675 = vmatprep.subr.mxu0 0.0
        %676 = vmatpush2.xpose.msra.mxu0 0.0
        %677 = vmatprep.subr.mxu0 0.0
        %678 = vmatpush2.xpose.msra.mxu0 0.0
        %679 = vmatprep.subr.mxu0 0.0
        %680 = vmatpush2.xpose.msra.mxu0 0.0
        %681 = vmatprep.subr.mxu0 0.0
        %682 = vmatpush2.xpose.msra.mxu0 0.0
        %683 = vmatprep.subr.mxu0 0.0
        %684 = vmatpush2.xpose.msra.mxu0 0.0
        %685 = vmatprep.subr.mxu0 0.0
        %686 = vmatpush2.xpose.msra.mxu0 0.0
        %687 = vmatprep.subr.mxu0 0.0
        %688 = vmatpush2.xpose.msra.mxu0 0.0
        %689 = vmatprep.subr.mxu0 0.0
        %690 = vmatpush2.xpose.msra.mxu0 0.0
        %691 = vmatprep.subr.mxu0 0.0
        %692 = vmatpush2.xpose.msra.mxu0 0.0
        %693 = vmatprep.subr.mxu0 0.0
        %694 = vmatpush2.xpose.msra.mxu0 0.0
        %695 = vmatprep.subr.mxu0 0.0
        %696 = vmatpush2.xpose.msra.mxu0 0.0
        %697 = vmatprep.subr.mxu0 0.0
        %698 = vmatpush2.xpose.msra.mxu0 0.0
        %699 = vmatprep.subr.mxu0 0.0
        %700 = vmatpush2.xpose.msra.mxu0 0.0
        %701 = vmatprep.subr.mxu0 0.0
        %702 = vmatpush2.xpose.msra.mxu0 0.0
        %703 = vmatprep.mubr.f32.mxu0 0.0
        %704 = vmatmul.mubr.f32.gmra.mxu0 %v315
        %v705 = vpop.f32.mrf.mxu0
        %v706 = vadd.f32 0.0, %v705
        %v707 = vpop.f32.mrf.mxu0
        %708 = vdwg.mxu0
        %709 = vmatprep.subr.mxu0 0.0
        %710 = vmatpush1.xpose.msra.mxu0 0.0
        %711 = vmatprep.subr.mxu0 0.0
        %712 = vmatpush1.xpose.msra.mxu0 0.0
        %713 = vmatprep.subr.mxu0 0.0
        %714 = vmatpush1.xpose.msra.mxu0 0.0
        %715 = vmatprep.subr.mxu0 0.0
        %716 = vmatpush1.xpose.msra.mxu0 0.0
        %717 = vmatprep.subr.mxu0 0.0
        %718 = vmatpush1.xpose.msra.mxu0 0.0
        %719 = vmatprep.subr.mxu0 0.0
        %720 = vmatpush1.xpose.msra.mxu0 0.0
        %721 = vmatprep.subr.mxu0 0.0
        %722 = vmatpush1.xpose.msra.mxu0 0.0
        %723 = vmatprep.subr.mxu0 0.0
        %724 = vmatpush1.xpose.msra.mxu0 0.0
        %725 = vmatprep.subr.mxu0 0.0
        %726 = vmatpush1.xpose.msra.mxu0 0.0
        %727 = vmatprep.subr.mxu0 0.0
        %728 = vmatpush1.xpose.msra.mxu0 0.0
        %729 = vmatprep.subr.mxu0 0.0
        %730 = vmatpush1.xpose.msra.mxu0 0.0
        %731 = vmatprep.subr.mxu0 0.0
        %732 = vmatpush1.xpose.msra.mxu0 0.0
        %733 = vmatprep.subr.mxu0 0.0
        %734 = vmatpush1.xpose.msra.mxu0 0.0
        %735 = vmatprep.subr.mxu0 0.0
        %736 = vmatpush1.xpose.msra.mxu0 0.0
        %737 = vmatprep.subr.mxu0 0.0
        %738 = vmatpush1.xpose.msra.mxu0 0.0
        %739 = vmatprep.subr.mxu0 0.0
        %740 = vmatpush1.xpose.msra.mxu0 %v332
        %741 = vmatprep.subr.mxu0 0.0
        %742 = vmatpush2.xpose.msra.mxu0 0.0
        %743 = vmatprep.subr.mxu0 0.0
        %744 = vmatpush2.xpose.msra.mxu0 0.0
        %745 = vmatprep.subr.mxu0 0.0
        %746 = vmatpush2.xpose.msra.mxu0 0.0
        %747 = vmatprep.subr.mxu0 0.0
        %748 = vmatpush2.xpose.msra.mxu0 0.0
        %749 = vmatprep.subr.mxu0 0.0
        %750 = vmatpush2.xpose.msra.mxu0 0.0
        %751 = vmatprep.subr.mxu0 0.0
        %752 = vmatpush2.xpose.msra.mxu0 0.0
        %753 = vmatprep.subr.mxu0 0.0
        %754 = vmatpush2.xpose.msra.mxu0 0.0
        %755 = vmatprep.subr.mxu0 0.0
        %756 = vmatpush2.xpose.msra.mxu0 0.0
        %757 = vmatprep.subr.mxu0 0.0
        %758 = vmatpush2.xpose.msra.mxu0 0.0
        %759 = vmatprep.subr.mxu0 0.0
        %760 = vmatpush2.xpose.msra.mxu0 0.0
        %761 = vmatprep.subr.mxu0 0.0
        %762 = vmatpush2.xpose.msra.mxu0 0.0
        %763 = vmatprep.subr.mxu0 0.0
        %764 = vmatpush2.xpose.msra.mxu0 0.0
        %765 = vmatprep.subr.mxu0 0.0
        %766 = vmatpush2.xpose.msra.mxu0 0.0
        %767 = vmatprep.subr.mxu0 0.0
        %768 = vmatpush2.xpose.msra.mxu0 0.0
        %769 = vmatprep.subr.mxu0 0.0
        %770 = vmatpush2.xpose.msra.mxu0 0.0
        %771 = vmatprep.subr.mxu0 0.0
        %772 = vmatpush2.xpose.msra.mxu0 0.0
        %773 = vmatprep.mubr.f32.mxu0 0.0
        %774 = vmatmul.mubr.f32.gmra.mxu0 %v316
        %v775 = vpop.f32.mrf.mxu0
        %v776 = vadd.f32 0.0, %v775
        %v777 = vpop.f32.mrf.mxu0
        %778 = vdwg.mxu0
        %779 = vmatprep.subr.mxu0 0.0
        %780 = vmatpush1.xpose.msra.mxu0 0.0
        %781 = vmatprep.subr.mxu0 0.0
        %782 = vmatpush1.xpose.msra.mxu0 0.0
        %783 = vmatprep.subr.mxu0 0.0
        %784 = vmatpush1.xpose.msra.mxu0 0.0
        %785 = vmatprep.subr.mxu0 0.0
        %786 = vmatpush1.xpose.msra.mxu0 0.0
        %787 = vmatprep.subr.mxu0 0.0
        %788 = vmatpush1.xpose.msra.mxu0 0.0
        %789 = vmatprep.subr.mxu0 0.0
        %790 = vmatpush1.xpose.msra.mxu0 0.0
        %791 = vmatprep.subr.mxu0 0.0
        %792 = vmatpush1.xpose.msra.mxu0 0.0
        %793 = vmatprep.subr.mxu0 0.0
        %794 = vmatpush1.xpose.msra.mxu0 0.0
        %795 = vmatprep.subr.mxu0 0.0
        %796 = vmatpush1.xpose.msra.mxu0 0.0
        %797 = vmatprep.subr.mxu0 0.0
        %798 = vmatpush1.xpose.msra.mxu0 0.0
        %799 = vmatprep.subr.mxu0 0.0
        %800 = vmatpush1.xpose.msra.mxu0 0.0
        %801 = vmatprep.subr.mxu0 0.0
        %802 = vmatpush1.xpose.msra.mxu0 0.0
        %803 = vmatprep.subr.mxu0 0.0
        %804 = vmatpush1.xpose.msra.mxu0 0.0
        %805 = vmatprep.subr.mxu0 0.0
        %806 = vmatpush1.xpose.msra.mxu0 0.0
        %807 = vmatprep.subr.mxu0 0.0
        %808 = vmatpush1.xpose.msra.mxu0 0.0
        %809 = vmatprep.subr.mxu0 0.0
        %810 = vmatpush1.xpose.msra.mxu0 %v333
        %811 = vmatprep.subr.mxu0 0.0
        %812 = vmatpush2.xpose.msra.mxu0 0.0
        %813 = vmatprep.subr.mxu0 0.0
        %814 = vmatpush2.xpose.msra.mxu0 0.0
        %815 = vmatprep.subr.mxu0 0.0
        %816 = vmatpush2.xpose.msra.mxu0 0.0
        %817 = vmatprep.subr.mxu0 0.0
        %818 = vmatpush2.xpose.msra.mxu0 0.0
        %819 = vmatprep.subr.mxu0 0.0
        %820 = vmatpush2.xpose.msra.mxu0 0.0
        %821 = vmatprep.subr.mxu0 0.0
        %822 = vmatpush2.xpose.msra.mxu0 0.0
        %823 = vmatprep.subr.mxu0 0.0
        %824 = vmatpush2.xpose.msra.mxu0 0.0
        %825 = vmatprep.subr.mxu0 0.0
        %826 = vmatpush2.xpose.msra.mxu0 0.0
        %827 = vmatprep.subr.mxu0 0.0
        %828 = vmatpush2.xpose.msra.mxu0 0.0
        %829 = vmatprep.subr.mxu0 0.0
        %830 = vmatpush2.xpose.msra.mxu0 0.0
        %831 = vmatprep.subr.mxu0 0.0
        %832 = vmatpush2.xpose.msra.mxu0 0.0
        %833 = vmatprep.subr.mxu0 0.0
        %834 = vmatpush2.xpose.msra.mxu0 0.0
        %835 = vmatprep.subr.mxu0 0.0
        %836 = vmatpush2.xpose.msra.mxu0 0.0
        %837 = vmatprep.subr.mxu0 0.0
        %838 = vmatpush2.xpose.msra.mxu0 0.0
        %839 = vmatprep.subr.mxu0 0.0
        %840 = vmatpush2.xpose.msra.mxu0 0.0
        %841 = vmatprep.subr.mxu0 0.0
        %842 = vmatpush2.xpose.msra.mxu0 0.0
        %843 = vmatprep.mubr.f32.mxu0 0.0
        %844 = vmatmul.mubr.f32.gmra.mxu0 %v317
        %v845 = vpop.f32.mrf.mxu0
        %v846 = vadd.f32 0.0, %v845
        %v847 = vpop.f32.mrf.mxu0
        %848 = vdwg.mxu0
        %849 = vmatprep.subr.mxu0 0.0
        %850 = vmatpush1.xpose.msra.mxu0 0.0
        %851 = vmatprep.subr.mxu0 0.0
        %852 = vmatpush1.xpose.msra.mxu0 0.0
        %853 = vmatprep.subr.mxu0 0.0
        %854 = vmatpush1.xpose.msra.mxu0 0.0
        %855 = vmatprep.subr.mxu0 0.0
        %856 = vmatpush1.xpose.msra.mxu0 0.0
        %857 = vmatprep.subr.mxu0 0.0
        %858 = vmatpush1.xpose.msra.mxu0 0.0
        %859 = vmatprep.subr.mxu0 0.0
        %860 = vmatpush1.xpose.msra.mxu0 0.0
        %861 = vmatprep.subr.mxu0 0.0
        %862 = vmatpush1.xpose.msra.mxu0 0.0
        %863 = vmatprep.subr.mxu0 0.0
        %864 = vmatpush1.xpose.msra.mxu0 0.0
        %865 = vmatprep.subr.mxu0 0.0
        %866 = vmatpush1.xpose.msra.mxu0 0.0
        %867 = vmatprep.subr.mxu0 0.0
        %868 = vmatpush1.xpose.msra.mxu0 0.0
        %869 = vmatprep.subr.mxu0 0.0
        %870 = vmatpush1.xpose.msra.mxu0 0.0
        %871 = vmatprep.subr.mxu0 0.0
        %872 = vmatpush1.xpose.msra.mxu0 0.0
        %873 = vmatprep.subr.mxu0 0.0
        %874 = vmatpush1.xpose.msra.mxu0 0.0
        %875 = vmatprep.subr.mxu0 0.0
        %876 = vmatpush1.xpose.msra.mxu0 0.0
        %877 = vmatprep.subr.mxu0 0.0
        %878 = vmatpush1.xpose.msra.mxu0 0.0
        %879 = vmatprep.subr.mxu0 0.0
        %880 = vmatpush1.xpose.msra.mxu0 %v334
        %881 = vmatprep.subr.mxu0 0.0
        %882 = vmatpush2.xpose.msra.mxu0 0.0
        %883 = vmatprep.subr.mxu0 0.0
        %884 = vmatpush2.xpose.msra.mxu0 0.0
        %885 = vmatprep.subr.mxu0 0.0
        %886 = vmatpush2.xpose.msra.mxu0 0.0
        %887 = vmatprep.subr.mxu0 0.0
        %888 = vmatpush2.xpose.msra.mxu0 0.0
        %889 = vmatprep.subr.mxu0 0.0
        %890 = vmatpush2.xpose.msra.mxu0 0.0
        %891 = vmatprep.subr.mxu0 0.0
        %892 = vmatpush2.xpose.msra.mxu0 0.0
        %893 = vmatprep.subr.mxu0 0.0
        %894 = vmatpush2.xpose.msra.mxu0 0.0
        %895 = vmatprep.subr.mxu0 0.0
        %896 = vmatpush2.xpose.msra.mxu0 0.0
        %897 = vmatprep.subr.mxu0 0.0
        %898 = vmatpush2.xpose.msra.mxu0 0.0
        %899 = vmatprep.subr.mxu0 0.0
        %900 = vmatpush2.xpose.msra.mxu0 0.0
        %901 = vmatprep.subr.mxu0 0.0
        %902 = vmatpush2.xpose.msra.mxu0 0.0
        %903 = vmatprep.subr.mxu0 0.0
        %904 = vmatpush2.xpose.msra.mxu0 0.0
        %905 = vmatprep.subr.mxu0 0.0
        %906 = vmatpush2.xpose.msra.mxu0 0.0
        %907 = vmatprep.subr.mxu0 0.0
        %908 = vmatpush2.xpose.msra.mxu0 0.0
        %909 = vmatprep.subr.mxu0 0.0
        %910 = vmatpush2.xpose.msra.mxu0 0.0
        %911 = vmatprep.subr.mxu0 0.0
        %912 = vmatpush2.xpose.msra.mxu0 0.0
        %913 = vmatprep.mubr.f32.mxu0 0.0
        %914 = vmatmul.mubr.f32.gmra.mxu0 %v318
        %v915 = vpop.f32.mrf.mxu0
        %v916 = vadd.f32 0.0, %v915
        %v917 = vpop.f32.mrf.mxu0
        %918 = vdwg.mxu0
        %919 = vmatprep.subr.mxu0 0.0
        %920 = vmatpush1.xpose.msra.mxu0 0.0
        %921 = vmatprep.subr.mxu0 0.0
        %922 = vmatpush1.xpose.msra.mxu0 0.0
        %923 = vmatprep.subr.mxu0 0.0
        %924 = vmatpush1.xpose.msra.mxu0 0.0
        %925 = vmatprep.subr.mxu0 0.0
        %926 = vmatpush1.xpose.msra.mxu0 0.0
        %927 = vmatprep.subr.mxu0 0.0
        %928 = vmatpush1.xpose.msra.mxu0 0.0
        %929 = vmatprep.subr.mxu0 0.0
        %930 = vmatpush1.xpose.msra.mxu0 0.0
        %931 = vmatprep.subr.mxu0 0.0
        %932 = vmatpush1.xpose.msra.mxu0 0.0
        %933 = vmatprep.subr.mxu0 0.0
        %934 = vmatpush1.xpose.msra.mxu0 0.0
        %935 = vmatprep.subr.mxu0 0.0
        %936 = vmatpush1.xpose.msra.mxu0 0.0
        %937 = vmatprep.subr.mxu0 0.0
        %938 = vmatpush1.xpose.msra.mxu0 0.0
        %939 = vmatprep.subr.mxu0 0.0
        %940 = vmatpush1.xpose.msra.mxu0 0.0
        %941 = vmatprep.subr.mxu0 0.0
        %942 = vmatpush1.xpose.msra.mxu0 0.0
        %943 = vmatprep.subr.mxu0 0.0
        %944 = vmatpush1.xpose.msra.mxu0 0.0
        %945 = vmatprep.subr.mxu0 0.0
        %946 = vmatpush1.xpose.msra.mxu0 0.0
        %947 = vmatprep.subr.mxu0 0.0
        %948 = vmatpush1.xpose.msra.mxu0 0.0
        %949 = vmatprep.subr.mxu0 0.0
        %950 = vmatpush1.xpose.msra.mxu0 %v335
        %951 = vmatprep.subr.mxu0 0.0
        %952 = vmatpush2.xpose.msra.mxu0 0.0
        %953 = vmatprep.subr.mxu0 0.0
        %954 = vmatpush2.xpose.msra.mxu0 0.0
        %955 = vmatprep.subr.mxu0 0.0
        %956 = vmatpush2.xpose.msra.mxu0 0.0
        %957 = vmatprep.subr.mxu0 0.0
        %958 = vmatpush2.xpose.msra.mxu0 0.0
        %959 = vmatprep.subr.mxu0 0.0
        %960 = vmatpush2.xpose.msra.mxu0 0.0
        %961 = vmatprep.subr.mxu0 0.0
        %962 = vmatpush2.xpose.msra.mxu0 0.0
        %963 = vmatprep.subr.mxu0 0.0
        %964 = vmatpush2.xpose.msra.mxu0 0.0
        %965 = vmatprep.subr.mxu0 0.0
        %966 = vmatpush2.xpose.msra.mxu0 0.0
        %967 = vmatprep.subr.mxu0 0.0
        %968 = vmatpush2.xpose.msra.mxu0 0.0
        %969 = vmatprep.subr.mxu0 0.0
        %970 = vmatpush2.xpose.msra.mxu0 0.0
        %971 = vmatprep.subr.mxu0 0.0
        %972 = vmatpush2.xpose.msra.mxu0 0.0
        %973 = vmatprep.subr.mxu0 0.0
        %974 = vmatpush2.xpose.msra.mxu0 0.0
        %975 = vmatprep.subr.mxu0 0.0
        %976 = vmatpush2.xpose.msra.mxu0 0.0
        %977 = vmatprep.subr.mxu0 0.0
        %978 = vmatpush2.xpose.msra.mxu0 0.0
        %979 = vmatprep.subr.mxu0 0.0
        %980 = vmatpush2.xpose.msra.mxu0 0.0
        %981 = vmatprep.subr.mxu0 0.0
        %982 = vmatpush2.xpose.msra.mxu0 0.0
        %983 = vmatprep.mubr.f32.mxu0 0.0
        %984 = vmatmul.mubr.f32.gmra.mxu0 %v319
        %v985 = vpop.f32.mrf.mxu0
        %v986 = vadd.f32 0.0, %v985
        %v987 = vpop.f32.mrf.mxu0
        %988 = vdwg.mxu0
        %989 = vmatprep.subr.mxu0 0.0
        %990 = vmatpush1.xpose.msra.mxu0 0.0
        %991 = vmatprep.subr.mxu0 0.0
        %992 = vmatpush1.xpose.msra.mxu0 0.0
        %993 = vmatprep.subr.mxu0 0.0
        %994 = vmatpush1.xpose.msra.mxu0 0.0
        %995 = vmatprep.subr.mxu0 0.0
        %996 = vmatpush1.xpose.msra.mxu0 0.0
        %997 = vmatprep.subr.mxu0 0.0
        %998 = vmatpush1.xpose.msra.mxu0 0.0
        %999 = vmatprep.subr.mxu0 0.0
        %1000 = vmatpush1.xpose.msra.mxu0 0.0
        %1001 = vmatprep.subr.mxu0 0.0
        %1002 = vmatpush1.xpose.msra.mxu0 0.0
        %1003 = vmatprep.subr.mxu0 0.0
        %1004 = vmatpush1.xpose.msra.mxu0 0.0
        %1005 = vmatprep.subr.mxu0 0.0
        %1006 = vmatpush1.xpose.msra.mxu0 0.0
        %1007 = vmatprep.subr.mxu0 0.0
        %1008 = vmatpush1.xpose.msra.mxu0 0.0
        %1009 = vmatprep.subr.mxu0 0.0
        %1010 = vmatpush1.xpose.msra.mxu0 0.0
        %1011 = vmatprep.subr.mxu0 0.0
        %1012 = vmatpush1.xpose.msra.mxu0 0.0
        %1013 = vmatprep.subr.mxu0 0.0
        %1014 = vmatpush1.xpose.msra.mxu0 0.0
        %1015 = vmatprep.subr.mxu0 0.0
        %1016 = vmatpush1.xpose.msra.mxu0 0.0
        %1017 = vmatprep.subr.mxu0 0.0
        %1018 = vmatpush1.xpose.msra.mxu0 0.0
        %1019 = vmatprep.subr.mxu0 0.0
        %1020 = vmatpush1.xpose.msra.mxu0 %v336
        %1021 = vmatprep.subr.mxu0 0.0
        %1022 = vmatpush2.xpose.msra.mxu0 0.0
        %1023 = vmatprep.subr.mxu0 0.0
        %1024 = vmatpush2.xpose.msra.mxu0 0.0
        %1025 = vmatprep.subr.mxu0 0.0
        %1026 = vmatpush2.xpose.msra.mxu0 0.0
        %1027 = vmatprep.subr.mxu0 0.0
        %1028 = vmatpush2.xpose.msra.mxu0 0.0
        %1029 = vmatprep.subr.mxu0 0.0
        %1030 = vmatpush2.xpose.msra.mxu0 0.0
        %1031 = vmatprep.subr.mxu0 0.0
        %1032 = vmatpush2.xpose.msra.mxu0 0.0
        %1033 = vmatprep.subr.mxu0 0.0
        %1034 = vmatpush2.xpose.msra.mxu0 0.0
        %1035 = vmatprep.subr.mxu0 0.0
        %1036 = vmatpush2.xpose.msra.mxu0 0.0
        %1037 = vmatprep.subr.mxu0 0.0
        %1038 = vmatpush2.xpose.msra.mxu0 0.0
        %1039 = vmatprep.subr.mxu0 0.0
        %1040 = vmatpush2.xpose.msra.mxu0 0.0
        %1041 = vmatprep.subr.mxu0 0.0
        %1042 = vmatpush2.xpose.msra.mxu0 0.0
        %1043 = vmatprep.subr.mxu0 0.0
        %1044 = vmatpush2.xpose.msra.mxu0 0.0
        %1045 = vmatprep.subr.mxu0 0.0
        %1046 = vmatpush2.xpose.msra.mxu0 0.0
        %1047 = vmatprep.subr.mxu0 0.0
        %1048 = vmatpush2.xpose.msra.mxu0 0.0
        %1049 = vmatprep.subr.mxu0 0.0
        %1050 = vmatpush2.xpose.msra.mxu0 0.0
        %1051 = vmatprep.subr.mxu0 0.0
        %1052 = vmatpush2.xpose.msra.mxu0 0.0
        %1053 = vmatprep.mubr.f32.mxu0 0.0
        %1054 = vmatmul.mubr.f32.gmra.mxu0 %v320
        %v1055 = vpop.f32.mrf.mxu0
        %v1056 = vadd.f32 0.0, %v1055
        %v1057 = vpop.f32.mrf.mxu0
        %1058 = vdwg.mxu0
        %1059 = vmatprep.subr.mxu0 0.0
        %1060 = vmatpush1.xpose.msra.mxu0 0.0
        %1061 = vmatprep.subr.mxu0 0.0
        %1062 = vmatpush1.xpose.msra.mxu0 0.0
        %1063 = vmatprep.subr.mxu0 0.0
        %1064 = vmatpush1.xpose.msra.mxu0 0.0
        %1065 = vmatprep.subr.mxu0 0.0
        %1066 = vmatpush1.xpose.msra.mxu0 0.0
        %1067 = vmatprep.subr.mxu0 0.0
        %1068 = vmatpush1.xpose.msra.mxu0 0.0
        %1069 = vmatprep.subr.mxu0 0.0
        %1070 = vmatpush1.xpose.msra.mxu0 0.0
        %1071 = vmatprep.subr.mxu0 0.0
        %1072 = vmatpush1.xpose.msra.mxu0 0.0
        %1073 = vmatprep.subr.mxu0 0.0
        %1074 = vmatpush1.xpose.msra.mxu0 0.0
        %1075 = vmatprep.subr.mxu0 0.0
        %1076 = vmatpush1.xpose.msra.mxu0 0.0
        %1077 = vmatprep.subr.mxu0 0.0
        %1078 = vmatpush1.xpose.msra.mxu0 0.0
        %1079 = vmatprep.subr.mxu0 0.0
        %1080 = vmatpush1.xpose.msra.mxu0 0.0
        %1081 = vmatprep.subr.mxu0 0.0
        %1082 = vmatpush1.xpose.msra.mxu0 0.0
        %1083 = vmatprep.subr.mxu0 0.0
        %1084 = vmatpush1.xpose.msra.mxu0 0.0
        %1085 = vmatprep.subr.mxu0 0.0
        %1086 = vmatpush1.xpose.msra.mxu0 0.0
        %1087 = vmatprep.subr.mxu0 0.0
        %1088 = vmatpush1.xpose.msra.mxu0 0.0
        %1089 = vmatprep.subr.mxu0 0.0
        %1090 = vmatpush1.xpose.msra.mxu0 %v337
        %1091 = vmatprep.subr.mxu0 0.0
        %1092 = vmatpush2.xpose.msra.mxu0 0.0
        %1093 = vmatprep.subr.mxu0 0.0
        %1094 = vmatpush2.xpose.msra.mxu0 0.0
        %1095 = vmatprep.subr.mxu0 0.0
        %1096 = vmatpush2.xpose.msra.mxu0 0.0
        %1097 = vmatprep.subr.mxu0 0.0
        %1098 = vmatpush2.xpose.msra.mxu0 0.0
        %1099 = vmatprep.subr.mxu0 0.0
        %1100 = vmatpush2.xpose.msra.mxu0 0.0
        %1101 = vmatprep.subr.mxu0 0.0
        %1102 = vmatpush2.xpose.msra.mxu0 0.0
        %1103 = vmatprep.subr.mxu0 0.0
        %1104 = vmatpush2.xpose.msra.mxu0 0.0
        %1105 = vmatprep.subr.mxu0 0.0
        %1106 = vmatpush2.xpose.msra.mxu0 0.0
        %1107 = vmatprep.subr.mxu0 0.0
        %1108 = vmatpush2.xpose.msra.mxu0 0.0
        %1109 = vmatprep.subr.mxu0 0.0
        %1110 = vmatpush2.xpose.msra.mxu0 0.0
        %1111 = vmatprep.subr.mxu0 0.0
        %1112 = vmatpush2.xpose.msra.mxu0 0.0
        %1113 = vmatprep.subr.mxu0 0.0
        %1114 = vmatpush2.xpose.msra.mxu0 0.0
        %1115 = vmatprep.subr.mxu0 0.0
        %1116 = vmatpush2.xpose.msra.mxu0 0.0
        %1117 = vmatprep.subr.mxu0 0.0
        %1118 = vmatpush2.xpose.msra.mxu0 0.0
        %1119 = vmatprep.subr.mxu0 0.0
        %1120 = vmatpush2.xpose.msra.mxu0 0.0
        %1121 = vmatprep.subr.mxu0 0.0
        %1122 = vmatpush2.xpose.msra.mxu0 0.0
        %1123 = vmatprep.mubr.f32.mxu0 0.0
        %1124 = vmatmul.mubr.f32.gmra.mxu0 %v321
        %v1125 = vpop.f32.mrf.mxu0
        %v1126 = vadd.f32 0.0, %v1125
        %v1127 = vpop.f32.mrf.mxu0
        %1128 = vdwg.mxu0
        %1129 = vmatprep.subr.mxu0 0.0
        %1130 = vmatpush1.xpose.msra.mxu0 0.0
        %1131 = vmatprep.subr.mxu0 0.0
        %1132 = vmatpush1.xpose.msra.mxu0 0.0
        %1133 = vmatprep.subr.mxu0 0.0
        %1134 = vmatpush1.xpose.msra.mxu0 0.0
        %1135 = vmatprep.subr.mxu0 0.0
        %1136 = vmatpush1.xpose.msra.mxu0 0.0
        %1137 = vmatprep.subr.mxu0 0.0
        %1138 = vmatpush1.xpose.msra.mxu0 0.0
        %1139 = vmatprep.subr.mxu0 0.0
        %1140 = vmatpush1.xpose.msra.mxu0 0.0
        %1141 = vmatprep.subr.mxu0 0.0
        %1142 = vmatpush1.xpose.msra.mxu0 0.0
        %1143 = vmatprep.subr.mxu0 0.0
        %1144 = vmatpush1.xpose.msra.mxu0 0.0
        %1145 = vmatprep.subr.mxu0 0.0
        %1146 = vmatpush1.xpose.msra.mxu0 0.0
        %1147 = vmatprep.subr.mxu0 0.0
        %1148 = vmatpush1.xpose.msra.mxu0 0.0
        %1149 = vmatprep.subr.mxu0 0.0
        %1150 = vmatpush1.xpose.msra.mxu0 0.0
        %1151 = vmatprep.subr.mxu0 0.0
        %1152 = vmatpush1.xpose.msra.mxu0 0.0
        %1153 = vmatprep.subr.mxu0 0.0
        %1154 = vmatpush1.xpose.msra.mxu0 0.0
        %1155 = vmatprep.subr.mxu0 0.0
        %1156 = vmatpush1.xpose.msra.mxu0 0.0
        %1157 = vmatprep.subr.mxu0 0.0
        %1158 = vmatpush1.xpose.msra.mxu0 0.0
        %1159 = vmatprep.subr.mxu0 0.0
        %1160 = vmatpush1.xpose.msra.mxu0 %v338
        %1161 = vmatprep.subr.mxu0 0.0
        %1162 = vmatpush2.xpose.msra.mxu0 0.0
        %1163 = vmatprep.subr.mxu0 0.0
        %1164 = vmatpush2.xpose.msra.mxu0 0.0
        %1165 = vmatprep.subr.mxu0 0.0
        %1166 = vmatpush2.xpose.msra.mxu0 0.0
        %1167 = vmatprep.subr.mxu0 0.0
        %1168 = vmatpush2.xpose.msra.mxu0 0.0
        %1169 = vmatprep.subr.mxu0 0.0
        %1170 = vmatpush2.xpose.msra.mxu0 0.0
        %1171 = vmatprep.subr.mxu0 0.0
        %1172 = vmatpush2.xpose.msra.mxu0 0.0
        %1173 = vmatprep.subr.mxu0 0.0
        %1174 = vmatpush2.xpose.msra.mxu0 0.0
        %1175 = vmatprep.subr.mxu0 0.0
        %1176 = vmatpush2.xpose.msra.mxu0 0.0
        %1177 = vmatprep.subr.mxu0 0.0
        %1178 = vmatpush2.xpose.msra.mxu0 0.0
        %1179 = vmatprep.subr.mxu0 0.0
        %1180 = vmatpush2.xpose.msra.mxu0 0.0
        %1181 = vmatprep.subr.mxu0 0.0
        %1182 = vmatpush2.xpose.msra.mxu0 0.0
        %1183 = vmatprep.subr.mxu0 0.0
        %1184 = vmatpush2.xpose.msra.mxu0 0.0
        %1185 = vmatprep.subr.mxu0 0.0
        %1186 = vmatpush2.xpose.msra.mxu0 0.0
        %1187 = vmatprep.subr.mxu0 0.0
        %1188 = vmatpush2.xpose.msra.mxu0 0.0
        %1189 = vmatprep.subr.mxu0 0.0
        %1190 = vmatpush2.xpose.msra.mxu0 0.0
        %1191 = vmatprep.subr.mxu0 0.0
        %1192 = vmatpush2.xpose.msra.mxu0 0.0
        %1193 = vmatprep.mubr.f32.mxu0 0.0
        %1194 = vmatmul.mubr.f32.gmra.mxu0 %v322
        %v1195 = vpop.f32.mrf.mxu0
        %v1196 = vadd.f32 0.0, %v1195
        %v1197 = vpop.f32.mrf.mxu0
        %1198 = vdwg.mxu0
        %1199 = vmatprep.subr.mxu0 0.0
        %1200 = vmatpush1.xpose.msra.mxu0 0.0
        %1201 = vmatprep.subr.mxu0 0.0
        %1202 = vmatpush1.xpose.msra.mxu0 0.0
        %1203 = vmatprep.subr.mxu0 0.0
        %1204 = vmatpush1.xpose.msra.mxu0 0.0
        %1205 = vmatprep.subr.mxu0 0.0
        %1206 = vmatpush1.xpose.msra.mxu0 0.0
        %1207 = vmatprep.subr.mxu0 0.0
        %1208 = vmatpush1.xpose.msra.mxu0 0.0
        %1209 = vmatprep.subr.mxu0 0.0
        %1210 = vmatpush1.xpose.msra.mxu0 0.0
        %1211 = vmatprep.subr.mxu0 0.0
        %1212 = vmatpush1.xpose.msra.mxu0 0.0
        %1213 = vmatprep.subr.mxu0 0.0
        %1214 = vmatpush1.xpose.msra.mxu0 0.0
        %1215 = vmatprep.subr.mxu0 0.0
        %1216 = vmatpush1.xpose.msra.mxu0 0.0
        %1217 = vmatprep.subr.mxu0 0.0
        %1218 = vmatpush1.xpose.msra.mxu0 0.0
        %1219 = vmatprep.subr.mxu0 0.0
        %1220 = vmatpush1.xpose.msra.mxu0 0.0
        %1221 = vmatprep.subr.mxu0 0.0
        %1222 = vmatpush1.xpose.msra.mxu0 0.0
        %1223 = vmatprep.subr.mxu0 0.0
        %1224 = vmatpush1.xpose.msra.mxu0 0.0
        %1225 = vmatprep.subr.mxu0 0.0
        %1226 = vmatpush1.xpose.msra.mxu0 0.0
        %1227 = vmatprep.subr.mxu0 0.0
        %1228 = vmatpush1.xpose.msra.mxu0 0.0
        %1229 = vmatprep.subr.mxu0 0.0
        %1230 = vmatpush1.xpose.msra.mxu0 %v339
        %1231 = vmatprep.subr.mxu0 0.0
        %1232 = vmatpush2.xpose.msra.mxu0 0.0
        %1233 = vmatprep.subr.mxu0 0.0
        %1234 = vmatpush2.xpose.msra.mxu0 0.0
        %1235 = vmatprep.subr.mxu0 0.0
        %1236 = vmatpush2.xpose.msra.mxu0 0.0
        %1237 = vmatprep.subr.mxu0 0.0
        %1238 = vmatpush2.xpose.msra.mxu0 0.0
        %1239 = vmatprep.subr.mxu0 0.0
        %1240 = vmatpush2.xpose.msra.mxu0 0.0
        %1241 = vmatprep.subr.mxu0 0.0
        %1242 = vmatpush2.xpose.msra.mxu0 0.0
        %1243 = vmatprep.subr.mxu0 0.0
        %1244 = vmatpush2.xpose.msra.mxu0 0.0
        %1245 = vmatprep.subr.mxu0 0.0
        %1246 = vmatpush2.xpose.msra.mxu0 0.0
        %1247 = vmatprep.subr.mxu0 0.0
        %1248 = vmatpush2.xpose.msra.mxu0 0.0
        %1249 = vmatprep.subr.mxu0 0.0
        %1250 = vmatpush2.xpose.msra.mxu0 0.0
        %1251 = vmatprep.subr.mxu0 0.0
        %1252 = vmatpush2.xpose.msra.mxu0 0.0
        %1253 = vmatprep.subr.mxu0 0.0
        %1254 = vmatpush2.xpose.msra.mxu0 0.0
        %1255 = vmatprep.subr.mxu0 0.0
        %1256 = vmatpush2.xpose.msra.mxu0 0.0
        %1257 = vmatprep.subr.mxu0 0.0
        %1258 = vmatpush2.xpose.msra.mxu0 0.0
        %1259 = vmatprep.subr.mxu0 0.0
        %1260 = vmatpush2.xpose.msra.mxu0 0.0
        %1261 = vmatprep.subr.mxu0 0.0
        %1262 = vmatpush2.xpose.msra.mxu0 0.0
        %1263 = vmatprep.mubr.f32.mxu0 0.0
        %1264 = vmatmul.mubr.f32.gmra.mxu0 %v323
        %v1265 = vpop.f32.mrf.mxu0
        %v1266 = vadd.f32 0.0, %v1265
        %v1267 = vpop.f32.mrf.mxu0
        %1268 = vdwg.mxu0
        %1269 = vmatprep.subr.mxu0 0.0
        %1270 = vmatpush1.xpose.msra.mxu0 0.0
        %1271 = vmatprep.subr.mxu0 0.0
        %1272 = vmatpush1.xpose.msra.mxu0 0.0
        %1273 = vmatprep.subr.mxu0 0.0
        %1274 = vmatpush1.xpose.msra.mxu0 0.0
        %1275 = vmatprep.subr.mxu0 0.0
        %1276 = vmatpush1.xpose.msra.mxu0 0.0
        %1277 = vmatprep.subr.mxu0 0.0
        %1278 = vmatpush1.xpose.msra.mxu0 0.0
        %1279 = vmatprep.subr.mxu0 0.0
        %1280 = vmatpush1.xpose.msra.mxu0 0.0
        %1281 = vmatprep.subr.mxu0 0.0
        %1282 = vmatpush1.xpose.msra.mxu0 0.0
        %1283 = vmatprep.subr.mxu0 0.0
        %1284 = vmatpush1.xpose.msra.mxu0 0.0
        %1285 = vmatprep.subr.mxu0 0.0
        %1286 = vmatpush1.xpose.msra.mxu0 0.0
        %1287 = vmatprep.subr.mxu0 0.0
        %1288 = vmatpush1.xpose.msra.mxu0 0.0
        %1289 = vmatprep.subr.mxu0 0.0
        %1290 = vmatpush1.xpose.msra.mxu0 0.0
        %1291 = vmatprep.subr.mxu0 0.0
        %1292 = vmatpush1.xpose.msra.mxu0 0.0
        %1293 = vmatprep.subr.mxu0 0.0
        %1294 = vmatpush1.xpose.msra.mxu0 0.0
        %1295 = vmatprep.subr.mxu0 0.0
        %1296 = vmatpush1.xpose.msra.mxu0 0.0
        %1297 = vmatprep.subr.mxu0 0.0
        %1298 = vmatpush1.xpose.msra.mxu0 0.0
        %1299 = vmatprep.subr.mxu0 0.0
        %1300 = vmatpush1.xpose.msra.mxu0 %v340
        %1301 = vmatprep.subr.mxu0 0.0
        %1302 = vmatpush2.xpose.msra.mxu0 0.0
        %1303 = vmatprep.subr.mxu0 0.0
        %1304 = vmatpush2.xpose.msra.mxu0 0.0
        %1305 = vmatprep.subr.mxu0 0.0
        %1306 = vmatpush2.xpose.msra.mxu0 0.0
        %1307 = vmatprep.subr.mxu0 0.0
        %1308 = vmatpush2.xpose.msra.mxu0 0.0
        %1309 = vmatprep.subr.mxu0 0.0
        %1310 = vmatpush2.xpose.msra.mxu0 0.0
        %1311 = vmatprep.subr.mxu0 0.0
        %1312 = vmatpush2.xpose.msra.mxu0 0.0
        %1313 = vmatprep.subr.mxu0 0.0
        %1314 = vmatpush2.xpose.msra.mxu0 0.0
        %1315 = vmatprep.subr.mxu0 0.0
        %1316 = vmatpush2.xpose.msra.mxu0 0.0
        %1317 = vmatprep.subr.mxu0 0.0
        %1318 = vmatpush2.xpose.msra.mxu0 0.0
        %1319 = vmatprep.subr.mxu0 0.0
        %1320 = vmatpush2.xpose.msra.mxu0 0.0
        %1321 = vmatprep.subr.mxu0 0.0
        %1322 = vmatpush2.xpose.msra.mxu0 0.0
        %1323 = vmatprep.subr.mxu0 0.0
        %1324 = vmatpush2.xpose.msra.mxu0 0.0
        %1325 = vmatprep.subr.mxu0 0.0
        %1326 = vmatpush2.xpose.msra.mxu0 0.0
        %1327 = vmatprep.subr.mxu0 0.0
        %1328 = vmatpush2.xpose.msra.mxu0 0.0
        %1329 = vmatprep.subr.mxu0 0.0
        %1330 = vmatpush2.xpose.msra.mxu0 0.0
        %1331 = vmatprep.subr.mxu0 0.0
        %1332 = vmatpush2.xpose.msra.mxu0 0.0
        %1333 = vmatprep.mubr.f32.mxu0 0.0
        %1334 = vmatmul.mubr.f32.gmra.mxu0 %v324
        %v1335 = vpop.f32.mrf.mxu0
        %v1336 = vadd.f32 0.0, %v1335
        %v1337 = vpop.f32.mrf.mxu0
        %1338 = vdwg.mxu0
        %1339 = vmatprep.subr.mxu0 0.0
        %1340 = vmatpush1.xpose.msra.mxu0 0.0
        %1341 = vmatprep.subr.mxu0 0.0
        %1342 = vmatpush1.xpose.msra.mxu0 0.0
        %1343 = vmatprep.subr.mxu0 0.0
        %1344 = vmatpush1.xpose.msra.mxu0 0.0
        %1345 = vmatprep.subr.mxu0 0.0
        %1346 = vmatpush1.xpose.msra.mxu0 0.0
        %1347 = vmatprep.subr.mxu0 0.0
        %1348 = vmatpush1.xpose.msra.mxu0 0.0
        %1349 = vmatprep.subr.mxu0 0.0
        %1350 = vmatpush1.xpose.msra.mxu0 0.0
        %1351 = vmatprep.subr.mxu0 0.0
        %1352 = vmatpush1.xpose.msra.mxu0 0.0
        %1353 = vmatprep.subr.mxu0 0.0
        %1354 = vmatpush1.xpose.msra.mxu0 0.0
        %1355 = vmatprep.subr.mxu0 0.0
        %1356 = vmatpush1.xpose.msra.mxu0 0.0
        %1357 = vmatprep.subr.mxu0 0.0
        %1358 = vmatpush1.xpose.msra.mxu0 0.0
        %1359 = vmatprep.subr.mxu0 0.0
        %1360 = vmatpush1.xpose.msra.mxu0 0.0
        %1361 = vmatprep.subr.mxu0 0.0
        %1362 = vmatpush1.xpose.msra.mxu0 0.0
        %1363 = vmatprep.subr.mxu0 0.0
        %1364 = vmatpush1.xpose.msra.mxu0 0.0
        %1365 = vmatprep.subr.mxu0 0.0
        %1366 = vmatpush1.xpose.msra.mxu0 0.0
        %1367 = vmatprep.subr.mxu0 0.0
        %1368 = vmatpush1.xpose.msra.mxu0 0.0
        %1369 = vmatprep.subr.mxu0 0.0
        %1370 = vmatpush1.xpose.msra.mxu0 %v341
        %1371 = vmatprep.subr.mxu0 0.0
        %1372 = vmatpush2.xpose.msra.mxu0 0.0
        %1373 = vmatprep.subr.mxu0 0.0
        %1374 = vmatpush2.xpose.msra.mxu0 0.0
        %1375 = vmatprep.subr.mxu0 0.0
        %1376 = vmatpush2.xpose.msra.mxu0 0.0
        %1377 = vmatprep.subr.mxu0 0.0
        %1378 = vmatpush2.xpose.msra.mxu0 0.0
        %1379 = vmatprep.subr.mxu0 0.0
        %1380 = vmatpush2.xpose.msra.mxu0 0.0
        %1381 = vmatprep.subr.mxu0 0.0
        %1382 = vmatpush2.xpose.msra.mxu0 0.0
        %1383 = vmatprep.subr.mxu0 0.0
        %1384 = vmatpush2.xpose.msra.mxu0 0.0
        %1385 = vmatprep.subr.mxu0 0.0
        %1386 = vmatpush2.xpose.msra.mxu0 0.0
        %1387 = vmatprep.subr.mxu0 0.0
        %1388 = vmatpush2.xpose.msra.mxu0 0.0
        %1389 = vmatprep.subr.mxu0 0.0
        %1390 = vmatpush2.xpose.msra.mxu0 0.0
        %1391 = vmatprep.subr.mxu0 0.0
        %1392 = vmatpush2.xpose.msra.mxu0 0.0
        %1393 = vmatprep.subr.mxu0 0.0
        %1394 = vmatpush2.xpose.msra.mxu0 0.0
        %1395 = vmatprep.subr.mxu0 0.0
        %1396 = vmatpush2.xpose.msra.mxu0 0.0
        %1397 = vmatprep.subr.mxu0 0.0
        %1398 = vmatpush2.xpose.msra.mxu0 0.0
        %1399 = vmatprep.subr.mxu0 0.0
        %1400 = vmatpush2.xpose.msra.mxu0 0.0
        %1401 = vmatprep.subr.mxu0 0.0
        %1402 = vmatpush2.xpose.msra.mxu0 0.0
        %1403 = vmatprep.mubr.f32.mxu0 0.0
        %1404 = vmatmul.mubr.f32.gmra.mxu0 %v325
        %v1405 = vpop.f32.mrf.mxu0
        %v1406 = vadd.f32 0.0, %v1405
        %v1407 = vpop.f32.mrf.mxu0
        %1408 = vdwg.mxu0
        %1409 = vmatprep.subr.mxu0 0.0
        %1410 = vmatpush1.xpose.msra.mxu0 0.0
        %1411 = vmatprep.subr.mxu0 0.0
        %1412 = vmatpush1.xpose.msra.mxu0 0.0
        %1413 = vmatprep.subr.mxu0 0.0
        %1414 = vmatpush1.xpose.msra.mxu0 0.0
        %1415 = vmatprep.subr.mxu0 0.0
        %1416 = vmatpush1.xpose.msra.mxu0 0.0
        %1417 = vmatprep.subr.mxu0 0.0
        %1418 = vmatpush1.xpose.msra.mxu0 0.0
        %1419 = vmatprep.subr.mxu0 0.0
        %1420 = vmatpush1.xpose.msra.mxu0 0.0
        %1421 = vmatprep.subr.mxu0 0.0
        %1422 = vmatpush1.xpose.msra.mxu0 0.0
        %1423 = vmatprep.subr.mxu0 0.0
        %1424 = vmatpush1.xpose.msra.mxu0 0.0
        %1425 = vmatprep.subr.mxu0 0.0
        %1426 = vmatpush1.xpose.msra.mxu0 0.0
        %1427 = vmatprep.subr.mxu0 0.0
        %1428 = vmatpush1.xpose.msra.mxu0 0.0
        %1429 = vmatprep.subr.mxu0 0.0
        %1430 = vmatpush1.xpose.msra.mxu0 0.0
        %1431 = vmatprep.subr.mxu0 0.0
        %1432 = vmatpush1.xpose.msra.mxu0 0.0
        %1433 = vmatprep.subr.mxu0 0.0
        %1434 = vmatpush1.xpose.msra.mxu0 0.0
        %1435 = vmatprep.subr.mxu0 0.0
        %1436 = vmatpush1.xpose.msra.mxu0 0.0
        %1437 = vmatprep.subr.mxu0 0.0
        %1438 = vmatpush1.xpose.msra.mxu0 0.0
        %1439 = vmatprep.subr.mxu0 0.0
        %1440 = vmatpush1.xpose.msra.mxu0 %v342
        %1441 = vmatprep.subr.mxu0 0.0
        %1442 = vmatpush2.xpose.msra.mxu0 0.0
        %1443 = vmatprep.subr.mxu0 0.0
        %1444 = vmatpush2.xpose.msra.mxu0 0.0
        %1445 = vmatprep.subr.mxu0 0.0
        %1446 = vmatpush2.xpose.msra.mxu0 0.0
        %1447 = vmatprep.subr.mxu0 0.0
        %1448 = vmatpush2.xpose.msra.mxu0 0.0
        %1449 = vmatprep.subr.mxu0 0.0
        %1450 = vmatpush2.xpose.msra.mxu0 0.0
        %1451 = vmatprep.subr.mxu0 0.0
        %1452 = vmatpush2.xpose.msra.mxu0 0.0
        %1453 = vmatprep.subr.mxu0 0.0
        %1454 = vmatpush2.xpose.msra.mxu0 0.0
        %1455 = vmatprep.subr.mxu0 0.0
        %1456 = vmatpush2.xpose.msra.mxu0 0.0
        %1457 = vmatprep.subr.mxu0 0.0
        %1458 = vmatpush2.xpose.msra.mxu0 0.0
        %1459 = vmatprep.subr.mxu0 0.0
        %1460 = vmatpush2.xpose.msra.mxu0 0.0
        %1461 = vmatprep.subr.mxu0 0.0
        %1462 = vmatpush2.xpose.msra.mxu0 0.0
        %1463 = vmatprep.subr.mxu0 0.0
        %1464 = vmatpush2.xpose.msra.mxu0 0.0
        %1465 = vmatprep.subr.mxu0 0.0
        %1466 = vmatpush2.xpose.msra.mxu0 0.0
        %1467 = vmatprep.subr.mxu0 0.0
        %1468 = vmatpush2.xpose.msra.mxu0 0.0
        %1469 = vmatprep.subr.mxu0 0.0
        %1470 = vmatpush2.xpose.msra.mxu0 0.0
        %1471 = vmatprep.subr.mxu0 0.0
        %1472 = vmatpush2.xpose.msra.mxu0 0.0
        %1473 = vmatprep.mubr.f32.mxu0 0.0
        %1474 = vmatmul.mubr.f32.gmra.mxu0 %v326
        %v1475 = vpop.f32.mrf.mxu0
        %v1476 = vadd.f32 0.0, %v1475
        %v1477 = vpop.f32.mrf.mxu0
        %1478 = vdwg.mxu0
        %v1479 = vmul.f32 %v426, 0.088388346
        %v1480 = vmul.f32 %v496, 0.088388346
        %v1481 = vmul.f32 %v566, 0.088388346
        %v1482 = vmul.f32 %v636, 0.088388346
        %v1483 = vmul.f32 %v706, 0.088388346
        %v1484 = vmul.f32 %v776, 0.088388346
        %v1485 = vmul.f32 %v846, 0.088388346
        %v1486 = vmul.f32 %v916, 0.088388346
        %v1487 = vmul.f32 %v986, 0.088388346
        %v1488 = vmul.f32 %v1056, 0.088388346
        %v1489 = vmul.f32 %v1126, 0.088388346
        %v1490 = vmul.f32 %v1196, 0.088388346
        %v1491 = vmul.f32 %v1266, 0.088388346
        %v1492 = vmul.f32 %v1336, 0.088388346
        %v1493 = vmul.f32 %v1406, 0.088388346
        %v1494 = vmul.f32 %v1476, 0.088388346
        %vm1495 = vcmask 64512
        %v1496 = vsel %vm1495, %v1479, -inf
        %1497 = vmax.xlane.f32.xlu0 %v1496
        %v1498 = vpop.xlane.xlu0 %1497
        %v1499 = vsel %vm1495, %v1480, -inf
        %1500 = vmax.xlane.f32.xlu0 %v1499
        %v1501 = vpop.xlane.xlu0 %1500
        %v1502 = vsel %vm1495, %v1481, -inf
        %1503 = vmax.xlane.f32.xlu0 %v1502
        %v1504 = vpop.xlane.xlu0 %1503
        %v1505 = vsel %vm1495, %v1482, -inf
        %1506 = vmax.xlane.f32.xlu0 %v1505
        %v1507 = vpop.xlane.xlu0 %1506
        %v1508 = vsel %vm1495, %v1483, -inf
        %1509 = vmax.xlane.f32.xlu0 %v1508
        %v1510 = vpop.xlane.xlu0 %1509
        %v1511 = vsel %vm1495, %v1484, -inf
        %1512 = vmax.xlane.f32.xlu0 %v1511
        %v1513 = vpop.xlane.xlu0 %1512
        %v1514 = vsel %vm1495, %v1485, -inf
        %1515 = vmax.xlane.f32.xlu0 %v1514
        %v1516 = vpop.xlane.xlu0 %1515
        %v1517 = vsel %vm1495, %v1486, -inf
        %1518 = vmax.xlane.f32.xlu0 %v1517
        %v1519 = vpop.xlane.xlu0 %1518
        %v1520 = vsel %vm1495, %v1487, -inf
        %1521 = vmax.xlane.f32.xlu0 %v1520
        %v1522 = vpop.xlane.xlu0 %1521
        %v1523 = vsel %vm1495, %v1488, -inf
        %1524 = vmax.xlane.f32.xlu0 %v1523
        %v1525 = vpop.xlane.xlu0 %1524
        %v1526 = vsel %vm1495, %v1489, -inf
        %1527 = vmax.xlane.f32.xlu0 %v1526
        %v1528 = vpop.xlane.xlu0 %1527
        %v1529 = vsel %vm1495, %v1490, -inf
        %1530 = vmax.xlane.f32.xlu0 %v1529
        %v1531 = vpop.xlane.xlu0 %1530
        %v1532 = vsel %vm1495, %v1491, -inf
        %1533 = vmax.xlane.f32.xlu0 %v1532
        %v1534 = vpop.xlane.xlu0 %1533
        %v1535 = vsel %vm1495, %v1492, -inf
        %1536 = vmax.xlane.f32.xlu0 %v1535
        %v1537 = vpop.xlane.xlu0 %1536
        %v1538 = vsel %vm1495, %v1493, -inf
        %1539 = vmax.xlane.f32.xlu0 %v1538
        %v1540 = vpop.xlane.xlu0 %1539
        %v1541 = vsel %vm1495, %v1494, -inf
        %1542 = vmax.xlane.f32.xlu0 %v1541
        %v1543 = vpop.xlane.xlu0 %1542
        %v1544 = vsub.f32 %v1479, %v1498
        %v1545 = vsub.f32 %v1480, %v1501
        %v1546 = vsub.f32 %v1481, %v1504
        %v1547 = vsub.f32 %v1482, %v1507
        %v1548 = vsub.f32 %v1483, %v1510
        %v1549 = vsub.f32 %v1484, %v1513
        %v1550 = vsub.f32 %v1485, %v1516
        %v1551 = vsub.f32 %v1486, %v1519
        %v1552 = vsub.f32 %v1487, %v1522
        %v1553 = vsub.f32 %v1488, %v1525
        %v1554 = vsub.f32 %v1489, %v1528
        %v1555 = vsub.f32 %v1490, %v1531
        %v1556 = vsub.f32 %v1491, %v1534
        %v1557 = vsub.f32 %v1492, %v1537
        %v1558 = vsub.f32 %v1493, %v1540
        %v1559 = vsub.f32 %v1494, %v1543
        %v1560 = vmul.f32 %v1544, 1.442695
        %v1561 = vpow.pop %v1560
        %v1562 = vmul.f32 %v1545, 1.442695
        %v1563 = vpow.pop %v1562
        %v1564 = vmul.f32 %v1546, 1.442695
        %v1565 = vpow.pop %v1564
        %v1566 = vmul.f32 %v1547, 1.442695
        %v1567 = vpow.pop %v1566
        %v1568 = vmul.f32 %v1548, 1.442695
        %v1569 = vpow.pop %v1568
        %v1570 = vmul.f32 %v1549, 1.442695
        %v1571 = vpow.pop %v1570
        %v1572 = vmul.f32 %v1550, 1.442695
        %v1573 = vpow.pop %v1572
        %v1574 = vmul.f32 %v1551, 1.442695
        %v1575 = vpow.pop %v1574
        %v1576 = vmul.f32 %v1552, 1.442695
        %v1577 = vpow.pop %v1576
        %v1578 = vmul.f32 %v1553, 1.442695
        %v1579 = vpow.pop %v1578
        %v1580 = vmul.f32 %v1554, 1.442695
        %v1581 = vpow.pop %v1580
        %v1582 = vmul.f32 %v1555, 1.442695
        %v1583 = vpow.pop %v1582
        %v1584 = vmul.f32 %v1556, 1.442695
        %v1585 = vpow.pop %v1584
        %v1586 = vmul.f32 %v1557, 1.442695
        %v1587 = vpow.pop %v1586
        %v1588 = vmul.f32 %v1558, 1.442695
        %v1589 = vpow.pop %v1588
        %v1590 = vmul.f32 %v1559, 1.442695
        %v1591 = vpow.pop %v1590
        %v1592 = vsel %vm1495, %v1561, 0.0
        %1593 = vadd.xlane.f32.xlu0 %v1592
        %v1594 = vpop.xlane.xlu0 %1593
        %v1595 = vsel %vm1495, %v1563, 0.0
        %1596 = vadd.xlane.f32.xlu0 %v1595
        %v1597 = vpop.xlane.xlu0 %1596
        %v1598 = vsel %vm1495, %v1565, 0.0
        %1599 = vadd.xlane.f32.xlu0 %v1598
        %v1600 = vpop.xlane.xlu0 %1599
        %v1601 = vsel %vm1495, %v1567, 0.0
        %1602 = vadd.xlane.f32.xlu0 %v1601
        %v1603 = vpop.xlane.xlu0 %1602
        %v1604 = vsel %vm1495, %v1569, 0.0
        %1605 = vadd.xlane.f32.xlu0 %v1604
        %v1606 = vpop.xlane.xlu0 %1605
        %v1607 = vsel %vm1495, %v1571, 0.0
        %1608 = vadd.xlane.f32.xlu0 %v1607
        %v1609 = vpop.xlane.xlu0 %1608
        %v1610 = vsel %vm1495, %v1573, 0.0
        %1611 = vadd.xlane.f32.xlu0 %v1610
        %v1612 = vpop.xlane.xlu0 %1611
        %v1613 = vsel %vm1495, %v1575, 0.0
        %1614 = vadd.xlane.f32.xlu0 %v1613
        %v1615 = vpop.xlane.xlu0 %1614
        %v1616 = vsel %vm1495, %v1577, 0.0
        %1617 = vadd.xlane.f32.xlu0 %v1616
        %v1618 = vpop.xlane.xlu0 %1617
        %v1619 = vsel %vm1495, %v1579, 0.0
        %1620 = vadd.xlane.f32.xlu0 %v1619
        %v1621 = vpop.xlane.xlu0 %1620
        %v1622 = vsel %vm1495, %v1581, 0.0
        %1623 = vadd.xlane.f32.xlu0 %v1622
        %v1624 = vpop.xlane.xlu0 %1623
        %v1625 = vsel %vm1495, %v1583, 0.0
        %1626 = vadd.xlane.f32.xlu0 %v1625
        %v1627 = vpop.xlane.xlu0 %1626
        %v1628 = vsel %vm1495, %v1585, 0.0
        %1629 = vadd.xlane.f32.xlu0 %v1628
        %v1630 = vpop.xlane.xlu0 %1629
        %v1631 = vsel %vm1495, %v1587, 0.0
        %1632 = vadd.xlane.f32.xlu0 %v1631
        %v1633 = vpop.xlane.xlu0 %1632
        %v1634 = vsel %vm1495, %v1589, 0.0
        %1635 = vadd.xlane.f32.xlu0 %v1634
        %v1636 = vpop.xlane.xlu0 %1635
        %v1637 = vsel %vm1495, %v1591, 0.0
        %1638 = vadd.xlane.f32.xlu0 %v1637
        %v1639 = vpop.xlane.xlu0 %1638
        %v1640 = vrcp.pop %v1594
        %v1641 = vrcp.pop %v1597
        %v1642 = vrcp.pop %v1600
        %v1643 = vrcp.pop %v1603
        %v1644 = vrcp.pop %v1606
        %v1645 = vrcp.pop %v1609
        %v1646 = vrcp.pop %v1612
        %v1647 = vrcp.pop %v1615
        %v1648 = vrcp.pop %v1618
        %v1649 = vrcp.pop %v1621
        %v1650 = vrcp.pop %v1624
        %v1651 = vrcp.pop %v1627
        %v1652 = vrcp.pop %v1630
        %v1653 = vrcp.pop %v1633
        %v1654 = vrcp.pop %v1636
        %v1655 = vrcp.pop %v1639
        %v1656 = vmul.f32 %v1561, %v1640
        %v1657 = vmul.f32 %v1563, %v1641
        %v1658 = vmul.f32 %v1565, %v1642
        %v1659 = vmul.f32 %v1567, %v1643
        %v1660 = vmul.f32 %v1569, %v1644
        %v1661 = vmul.f32 %v1571, %v1645
        %v1662 = vmul.f32 %v1573, %v1646
        %v1663 = vmul.f32 %v1575, %v1647
        %v1664 = vmul.f32 %v1577, %v1648
        %v1665 = vmul.f32 %v1579, %v1649
        %v1666 = vmul.f32 %v1581, %v1650
        %v1667 = vmul.f32 %v1583, %v1651
        %v1668 = vmul.f32 %v1585, %v1652
        %v1669 = vmul.f32 %v1587, %v1653
        %v1670 = vmul.f32 %v1589, %v1654
        %v1671 = vmul.f32 %v1591, %v1655
        %v1673 = vsel %vm1495, %v1656, 0
        %1675 = vmatprep.subr.mxu0 0.0
        %1676 = vmatpush1.msra.mxu0 0.0
        %1677 = vmatprep.subr.mxu0 0.0
        %1678 = vmatpush1.msra.mxu0 0.0
        %1679 = vmatprep.subr.mxu0 0.0
        %1680 = vmatpush1.msra.mxu0 0.0
        %1681 = vmatprep.subr.mxu0 0.0
        %1682 = vmatpush1.msra.mxu0 0.0
        %1683 = vmatprep.subr.mxu0 0.0
        %1684 = vmatpush1.msra.mxu0 0.0
        %1685 = vmatprep.subr.mxu0 0.0
        %1686 = vmatpush1.msra.mxu0 0.0
        %1687 = vmatprep.subr.mxu0 0.0
        %1688 = vmatpush1.msra.mxu0 0.0
        %1689 = vmatprep.subr.mxu0 0.0
        %1690 = vmatpush1.msra.mxu0 0.0
        %1691 = vmatprep.subr.mxu0 0.0
        %1692 = vmatpush1.msra.mxu0 0.0
        %1693 = vmatprep.subr.mxu0 0.0
        %1694 = vmatpush1.msra.mxu0 0.0
        %1695 = vmatprep.subr.mxu0 0.0
        %1696 = vmatpush1.msra.mxu0 0.0
        %1697 = vmatprep.subr.mxu0 0.0
        %1698 = vmatpush1.msra.mxu0 0.0
        %1699 = vmatprep.subr.mxu0 0.0
        %1700 = vmatpush1.msra.mxu0 0.0
        %1701 = vmatprep.subr.mxu0 0.0
        %1702 = vmatpush1.msra.mxu0 0.0
        %1703 = vmatprep.subr.mxu0 0.0
        %1704 = vmatpush1.msra.mxu0 0.0
        %1705 = vmatprep.subr.mxu0 0.0
        %1706 = vmatpush1.msra.mxu0 %v343
        %1707 = vmatprep.subr.mxu0 0.0
        %1708 = vmatpush2.msra.mxu0 0.0
        %1709 = vmatprep.subr.mxu0 0.0
        %1710 = vmatpush2.msra.mxu0 0.0
        %1711 = vmatprep.subr.mxu0 0.0
        %1712 = vmatpush2.msra.mxu0 0.0
        %1713 = vmatprep.subr.mxu0 0.0
        %1714 = vmatpush2.msra.mxu0 0.0
        %1715 = vmatprep.subr.mxu0 0.0
        %1716 = vmatpush2.msra.mxu0 0.0
        %1717 = vmatprep.subr.mxu0 0.0
        %1718 = vmatpush2.msra.mxu0 0.0
        %1719 = vmatprep.subr.mxu0 0.0
        %1720 = vmatpush2.msra.mxu0 0.0
        %1721 = vmatprep.subr.mxu0 0.0
        %1722 = vmatpush2.msra.mxu0 0.0
        %1723 = vmatprep.subr.mxu0 0.0
        %1724 = vmatpush2.msra.mxu0 0.0
        %1725 = vmatprep.subr.mxu0 0.0
        %1726 = vmatpush2.msra.mxu0 0.0
        %1727 = vmatprep.subr.mxu0 0.0
        %1728 = vmatpush2.msra.mxu0 0.0
        %1729 = vmatprep.subr.mxu0 0.0
        %1730 = vmatpush2.msra.mxu0 0.0
        %1731 = vmatprep.subr.mxu0 0.0
        %1732 = vmatpush2.msra.mxu0 0.0
        %1733 = vmatprep.subr.mxu0 0.0
        %1734 = vmatpush2.msra.mxu0 0.0
        %1735 = vmatprep.subr.mxu0 0.0
        %1736 = vmatpush2.msra.mxu0 0.0
        %1737 = vmatprep.subr.mxu0 0.0
        %1738 = vmatpush2.msra.mxu0 0.0
        %1739 = vmatprep.mubr.f32.mxu0 0.0
        %1740 = vmatmul.mubr.f32.gmra.mxu0 %v1673
        %v1741 = vpop.f32.mrf.mxu0
        %v1742 = vadd.f32 0.0, %v1741
        %v1743 = vpop.f32.mrf.mxu0
        %1744 = vdwg.mxu0
        %v1746 = vsel %vm1495, %v1657, 0
        %1748 = vmatprep.subr.mxu0 0.0
        %1749 = vmatpush1.msra.mxu0 0.0
        %1750 = vmatprep.subr.mxu0 0.0
        %1751 = vmatpush1.msra.mxu0 0.0
        %1752 = vmatprep.subr.mxu0 0.0
        %1753 = vmatpush1.msra.mxu0 0.0
        %1754 = vmatprep.subr.mxu0 0.0
        %1755 = vmatpush1.msra.mxu0 0.0
        %1756 = vmatprep.subr.mxu0 0.0
        %1757 = vmatpush1.msra.mxu0 0.0
        %1758 = vmatprep.subr.mxu0 0.0
        %1759 = vmatpush1.msra.mxu0 0.0
        %1760 = vmatprep.subr.mxu0 0.0
        %1761 = vmatpush1.msra.mxu0 0.0
        %1762 = vmatprep.subr.mxu0 0.0
        %1763 = vmatpush1.msra.mxu0 0.0
        %1764 = vmatprep.subr.mxu0 0.0
        %1765 = vmatpush1.msra.mxu0 0.0
        %1766 = vmatprep.subr.mxu0 0.0
        %1767 = vmatpush1.msra.mxu0 0.0
        %1768 = vmatprep.subr.mxu0 0.0
        %1769 = vmatpush1.msra.mxu0 0.0
        %1770 = vmatprep.subr.mxu0 0.0
        %1771 = vmatpush1.msra.mxu0 0.0
        %1772 = vmatprep.subr.mxu0 0.0
        %1773 = vmatpush1.msra.mxu0 0.0
        %1774 = vmatprep.subr.mxu0 0.0
        %1775 = vmatpush1.msra.mxu0 0.0
        %1776 = vmatprep.subr.mxu0 0.0
        %1777 = vmatpush1.msra.mxu0 0.0
        %1778 = vmatprep.subr.mxu0 0.0
        %1779 = vmatpush1.msra.mxu0 %v344
        %1780 = vmatprep.subr.mxu0 0.0
        %1781 = vmatpush2.msra.mxu0 0.0
        %1782 = vmatprep.subr.mxu0 0.0
        %1783 = vmatpush2.msra.mxu0 0.0
        %1784 = vmatprep.subr.mxu0 0.0
        %1785 = vmatpush2.msra.mxu0 0.0
        %1786 = vmatprep.subr.mxu0 0.0
        %1787 = vmatpush2.msra.mxu0 0.0
        %1788 = vmatprep.subr.mxu0 0.0
        %1789 = vmatpush2.msra.mxu0 0.0
        %1790 = vmatprep.subr.mxu0 0.0
        %1791 = vmatpush2.msra.mxu0 0.0
        %1792 = vmatprep.subr.mxu0 0.0
        %1793 = vmatpush2.msra.mxu0 0.0
        %1794 = vmatprep.subr.mxu0 0.0
        %1795 = vmatpush2.msra.mxu0 0.0
        %1796 = vmatprep.subr.mxu0 0.0
        %1797 = vmatpush2.msra.mxu0 0.0
        %1798 = vmatprep.subr.mxu0 0.0
        %1799 = vmatpush2.msra.mxu0 0.0
        %1800 = vmatprep.subr.mxu0 0.0
        %1801 = vmatpush2.msra.mxu0 0.0
        %1802 = vmatprep.subr.mxu0 0.0
        %1803 = vmatpush2.msra.mxu0 0.0
        %1804 = vmatprep.subr.mxu0 0.0
        %1805 = vmatpush2.msra.mxu0 0.0
        %1806 = vmatprep.subr.mxu0 0.0
        %1807 = vmatpush2.msra.mxu0 0.0
        %1808 = vmatprep.subr.mxu0 0.0
        %1809 = vmatpush2.msra.mxu0 0.0
        %1810 = vmatprep.subr.mxu0 0.0
        %1811 = vmatpush2.msra.mxu0 0.0
        %1812 = vmatprep.mubr.f32.mxu0 0.0
        %1813 = vmatmul.mubr.f32.gmra.mxu0 %v1746
        %v1814 = vpop.f32.mrf.mxu0
        %v1815 = vadd.f32 0.0, %v1814
        %v1816 = vpop.f32.mrf.mxu0
        %1817 = vdwg.mxu0
        %v1819 = vsel %vm1495, %v1658, 0
        %1821 = vmatprep.subr.mxu0 0.0
        %1822 = vmatpush1.msra.mxu0 0.0
        %1823 = vmatprep.subr.mxu0 0.0
        %1824 = vmatpush1.msra.mxu0 0.0
        %1825 = vmatprep.subr.mxu0 0.0
        %1826 = vmatpush1.msra.mxu0 0.0
        %1827 = vmatprep.subr.mxu0 0.0
        %1828 = vmatpush1.msra.mxu0 0.0
        %1829 = vmatprep.subr.mxu0 0.0
        %1830 = vmatpush1.msra.mxu0 0.0
        %1831 = vmatprep.subr.mxu0 0.0
        %1832 = vmatpush1.msra.mxu0 0.0
        %1833 = vmatprep.subr.mxu0 0.0
        %1834 = vmatpush1.msra.mxu0 0.0
        %1835 = vmatprep.subr.mxu0 0.0
        %1836 = vmatpush1.msra.mxu0 0.0
        %1837 = vmatprep.subr.mxu0 0.0
        %1838 = vmatpush1.msra.mxu0 0.0
        %1839 = vmatprep.subr.mxu0 0.0
        %1840 = vmatpush1.msra.mxu0 0.0
        %1841 = vmatprep.subr.mxu0 0.0
        %1842 = vmatpush1.msra.mxu0 0.0
        %1843 = vmatprep.subr.mxu0 0.0
        %1844 = vmatpush1.msra.mxu0 0.0
        %1845 = vmatprep.subr.mxu0 0.0
        %1846 = vmatpush1.msra.mxu0 0.0
        %1847 = vmatprep.subr.mxu0 0.0
        %1848 = vmatpush1.msra.mxu0 0.0
        %1849 = vmatprep.subr.mxu0 0.0
        %1850 = vmatpush1.msra.mxu0 0.0
        %1851 = vmatprep.subr.mxu0 0.0
        %1852 = vmatpush1.msra.mxu0 %v345
        %1853 = vmatprep.subr.mxu0 0.0
        %1854 = vmatpush2.msra.mxu0 0.0
        %1855 = vmatprep.subr.mxu0 0.0
        %1856 = vmatpush2.msra.mxu0 0.0
        %1857 = vmatprep.subr.mxu0 0.0
        %1858 = vmatpush2.msra.mxu0 0.0
        %1859 = vmatprep.subr.mxu0 0.0
        %1860 = vmatpush2.msra.mxu0 0.0
        %1861 = vmatprep.subr.mxu0 0.0
        %1862 = vmatpush2.msra.mxu0 0.0
        %1863 = vmatprep.subr.mxu0 0.0
        %1864 = vmatpush2.msra.mxu0 0.0
        %1865 = vmatprep.subr.mxu0 0.0
        %1866 = vmatpush2.msra.mxu0 0.0
        %1867 = vmatprep.subr.mxu0 0.0
        %1868 = vmatpush2.msra.mxu0 0.0
        %1869 = vmatprep.subr.mxu0 0.0
        %1870 = vmatpush2.msra.mxu0 0.0
        %1871 = vmatprep.subr.mxu0 0.0
        %1872 = vmatpush2.msra.mxu0 0.0
        %1873 = vmatprep.subr.mxu0 0.0
        %1874 = vmatpush2.msra.mxu0 0.0
        %1875 = vmatprep.subr.mxu0 0.0
        %1876 = vmatpush2.msra.mxu0 0.0
        %1877 = vmatprep.subr.mxu0 0.0
        %1878 = vmatpush2.msra.mxu0 0.0
        %1879 = vmatprep.subr.mxu0 0.0
        %1880 = vmatpush2.msra.mxu0 0.0
        %1881 = vmatprep.subr.mxu0 0.0
        %1882 = vmatpush2.msra.mxu0 0.0
        %1883 = vmatprep.subr.mxu0 0.0
        %1884 = vmatpush2.msra.mxu0 0.0
        %1885 = vmatprep.mubr.f32.mxu0 0.0
        %1886 = vmatmul.mubr.f32.gmra.mxu0 %v1819
        %v1887 = vpop.f32.mrf.mxu0
        %v1888 = vadd.f32 0.0, %v1887
        %v1889 = vpop.f32.mrf.mxu0
        %1890 = vdwg.mxu0
        %v1892 = vsel %vm1495, %v1659, 0
        %1894 = vmatprep.subr.mxu0 0.0
        %1895 = vmatpush1.msra.mxu0 0.0
        %1896 = vmatprep.subr.mxu0 0.0
        %1897 = vmatpush1.msra.mxu0 0.0
        %1898 = vmatprep.subr.mxu0 0.0
        %1899 = vmatpush1.msra.mxu0 0.0
        %1900 = vmatprep.subr.mxu0 0.0
        %1901 = vmatpush1.msra.mxu0 0.0
        %1902 = vmatprep.subr.mxu0 0.0
        %1903 = vmatpush1.msra.mxu0 0.0
        %1904 = vmatprep.subr.mxu0 0.0
        %1905 = vmatpush1.msra.mxu0 0.0
        %1906 = vmatprep.subr.mxu0 0.0
        %1907 = vmatpush1.msra.mxu0 0.0
        %1908 = vmatprep.subr.mxu0 0.0
        %1909 = vmatpush1.msra.mxu0 0.0
        %1910 = vmatprep.subr.mxu0 0.0
        %1911 = vmatpush1.msra.mxu0 0.0
        %1912 = vmatprep.subr.mxu0 0.0
        %1913 = vmatpush1.msra.mxu0 0.0
        %1914 = vmatprep.subr.mxu0 0.0
        %1915 = vmatpush1.msra.mxu0 0.0
        %1916 = vmatprep.subr.mxu0 0.0
        %1917 = vmatpush1.msra.mxu0 0.0
        %1918 = vmatprep.subr.mxu0 0.0
        %1919 = vmatpush1.msra.mxu0 0.0
        %1920 = vmatprep.subr.mxu0 0.0
        %1921 = vmatpush1.msra.mxu0 0.0
        %1922 = vmatprep.subr.mxu0 0.0
        %1923 = vmatpush1.msra.mxu0 0.0
        %1924 = vmatprep.subr.mxu0 0.0
        %1925 = vmatpush1.msra.mxu0 %v346
        %1926 = vmatprep.subr.mxu0 0.0
        %1927 = vmatpush2.msra.mxu0 0.0
        %1928 = vmatprep.subr.mxu0 0.0
        %1929 = vmatpush2.msra.mxu0 0.0
        %1930 = vmatprep.subr.mxu0 0.0
        %1931 = vmatpush2.msra.mxu0 0.0
        %1932 = vmatprep.subr.mxu0 0.0
        %1933 = vmatpush2.msra.mxu0 0.0
        %1934 = vmatprep.subr.mxu0 0.0
        %1935 = vmatpush2.msra.mxu0 0.0
        %1936 = vmatprep.subr.mxu0 0.0
        %1937 = vmatpush2.msra.mxu0 0.0
        %1938 = vmatprep.subr.mxu0 0.0
        %1939 = vmatpush2.msra.mxu0 0.0
        %1940 = vmatprep.subr.mxu0 0.0
        %1941 = vmatpush2.msra.mxu0 0.0
        %1942 = vmatprep.subr.mxu0 0.0
        %1943 = vmatpush2.msra.mxu0 0.0
        %1944 = vmatprep.subr.mxu0 0.0
        %1945 = vmatpush2.msra.mxu0 0.0
        %1946 = vmatprep.subr.mxu0 0.0
        %1947 = vmatpush2.msra.mxu0 0.0
        %1948 = vmatprep.subr.mxu0 0.0
        %1949 = vmatpush2.msra.mxu0 0.0
        %1950 = vmatprep.subr.mxu0 0.0
        %1951 = vmatpush2.msra.mxu0 0.0
        %1952 = vmatprep.subr.mxu0 0.0
        %1953 = vmatpush2.msra.mxu0 0.0
        %1954 = vmatprep.subr.mxu0 0.0
        %1955 = vmatpush2.msra.mxu0 0.0
        %1956 = vmatprep.subr.mxu0 0.0
        %1957 = vmatpush2.msra.mxu0 0.0
        %1958 = vmatprep.mubr.f32.mxu0 0.0
        %1959 = vmatmul.mubr.f32.gmra.mxu0 %v1892
        %v1960 = vpop.f32.mrf.mxu0
        %v1961 = vadd.f32 0.0, %v1960
        %v1962 = vpop.f32.mrf.mxu0
        %1963 = vdwg.mxu0
        %v1965 = vsel %vm1495, %v1660, 0
        %1967 = vmatprep.subr.mxu0 0.0
        %1968 = vmatpush1.msra.mxu0 0.0
        %1969 = vmatprep.subr.mxu0 0.0
        %1970 = vmatpush1.msra.mxu0 0.0
        %1971 = vmatprep.subr.mxu0 0.0
        %1972 = vmatpush1.msra.mxu0 0.0
        %1973 = vmatprep.subr.mxu0 0.0
        %1974 = vmatpush1.msra.mxu0 0.0
        %1975 = vmatprep.subr.mxu0 0.0
        %1976 = vmatpush1.msra.mxu0 0.0
        %1977 = vmatprep.subr.mxu0 0.0
        %1978 = vmatpush1.msra.mxu0 0.0
        %1979 = vmatprep.subr.mxu0 0.0
        %1980 = vmatpush1.msra.mxu0 0.0
        %1981 = vmatprep.subr.mxu0 0.0
        %1982 = vmatpush1.msra.mxu0 0.0
        %1983 = vmatprep.subr.mxu0 0.0
        %1984 = vmatpush1.msra.mxu0 0.0
        %1985 = vmatprep.subr.mxu0 0.0
        %1986 = vmatpush1.msra.mxu0 0.0
        %1987 = vmatprep.subr.mxu0 0.0
        %1988 = vmatpush1.msra.mxu0 0.0
        %1989 = vmatprep.subr.mxu0 0.0
        %1990 = vmatpush1.msra.mxu0 0.0
        %1991 = vmatprep.subr.mxu0 0.0
        %1992 = vmatpush1.msra.mxu0 0.0
        %1993 = vmatprep.subr.mxu0 0.0
        %1994 = vmatpush1.msra.mxu0 0.0
        %1995 = vmatprep.subr.mxu0 0.0
        %1996 = vmatpush1.msra.mxu0 0.0
        %1997 = vmatprep.subr.mxu0 0.0
        %1998 = vmatpush1.msra.mxu0 %v347
        %1999 = vmatprep.subr.mxu0 0.0
        %2000 = vmatpush2.msra.mxu0 0.0
        %2001 = vmatprep.subr.mxu0 0.0
        %2002 = vmatpush2.msra.mxu0 0.0
        %2003 = vmatprep.subr.mxu0 0.0
        %2004 = vmatpush2.msra.mxu0 0.0
        %2005 = vmatprep.subr.mxu0 0.0
        %2006 = vmatpush2.msra.mxu0 0.0
        %2007 = vmatprep.subr.mxu0 0.0
        %2008 = vmatpush2.msra.mxu0 0.0
        %2009 = vmatprep.subr.mxu0 0.0
        %2010 = vmatpush2.msra.mxu0 0.0
        %2011 = vmatprep.subr.mxu0 0.0
        %2012 = vmatpush2.msra.mxu0 0.0
        %2013 = vmatprep.subr.mxu0 0.0
        %2014 = vmatpush2.msra.mxu0 0.0
        %2015 = vmatprep.subr.mxu0 0.0
        %2016 = vmatpush2.msra.mxu0 0.0
        %2017 = vmatprep.subr.mxu0 0.0
        %2018 = vmatpush2.msra.mxu0 0.0
        %2019 = vmatprep.subr.mxu0 0.0
        %2020 = vmatpush2.msra.mxu0 0.0
        %2021 = vmatprep.subr.mxu0 0.0
        %2022 = vmatpush2.msra.mxu0 0.0
        %2023 = vmatprep.subr.mxu0 0.0
        %2024 = vmatpush2.msra.mxu0 0.0
        %2025 = vmatprep.subr.mxu0 0.0
        %2026 = vmatpush2.msra.mxu0 0.0
        %2027 = vmatprep.subr.mxu0 0.0
        %2028 = vmatpush2.msra.mxu0 0.0
        %2029 = vmatprep.subr.mxu0 0.0
        %2030 = vmatpush2.msra.mxu0 0.0
        %2031 = vmatprep.mubr.f32.mxu0 0.0
        %2032 = vmatmul.mubr.f32.gmra.mxu0 %v1965
        %v2033 = vpop.f32.mrf.mxu0
        %v2034 = vadd.f32 0.0, %v2033
        %v2035 = vpop.f32.mrf.mxu0
        %2036 = vdwg.mxu0
        %v2038 = vsel %vm1495, %v1661, 0
        %2040 = vmatprep.subr.mxu0 0.0
        %2041 = vmatpush1.msra.mxu0 0.0
        %2042 = vmatprep.subr.mxu0 0.0
        %2043 = vmatpush1.msra.mxu0 0.0
        %2044 = vmatprep.subr.mxu0 0.0
        %2045 = vmatpush1.msra.mxu0 0.0
        %2046 = vmatprep.subr.mxu0 0.0
        %2047 = vmatpush1.msra.mxu0 0.0
        %2048 = vmatprep.subr.mxu0 0.0
        %2049 = vmatpush1.msra.mxu0 0.0
        %2050 = vmatprep.subr.mxu0 0.0
        %2051 = vmatpush1.msra.mxu0 0.0
        %2052 = vmatprep.subr.mxu0 0.0
        %2053 = vmatpush1.msra.mxu0 0.0
        %2054 = vmatprep.subr.mxu0 0.0
        %2055 = vmatpush1.msra.mxu0 0.0
        %2056 = vmatprep.subr.mxu0 0.0
        %2057 = vmatpush1.msra.mxu0 0.0
        %2058 = vmatprep.subr.mxu0 0.0
        %2059 = vmatpush1.msra.mxu0 0.0
        %2060 = vmatprep.subr.mxu0 0.0
        %2061 = vmatpush1.msra.mxu0 0.0
        %2062 = vmatprep.subr.mxu0 0.0
        %2063 = vmatpush1.msra.mxu0 0.0
        %2064 = vmatprep.subr.mxu0 0.0
        %2065 = vmatpush1.msra.mxu0 0.0
        %2066 = vmatprep.subr.mxu0 0.0
        %2067 = vmatpush1.msra.mxu0 0.0
        %2068 = vmatprep.subr.mxu0 0.0
        %2069 = vmatpush1.msra.mxu0 0.0
        %2070 = vmatprep.subr.mxu0 0.0
        %2071 = vmatpush1.msra.mxu0 %v348
        %2072 = vmatprep.subr.mxu0 0.0
        %2073 = vmatpush2.msra.mxu0 0.0
        %2074 = vmatprep.subr.mxu0 0.0
        %2075 = vmatpush2.msra.mxu0 0.0
        %2076 = vmatprep.subr.mxu0 0.0
        %2077 = vmatpush2.msra.mxu0 0.0
        %2078 = vmatprep.subr.mxu0 0.0
        %2079 = vmatpush2.msra.mxu0 0.0
        %2080 = vmatprep.subr.mxu0 0.0
        %2081 = vmatpush2.msra.mxu0 0.0
        %2082 = vmatprep.subr.mxu0 0.0
        %2083 = vmatpush2.msra.mxu0 0.0
        %2084 = vmatprep.subr.mxu0 0.0
        %2085 = vmatpush2.msra.mxu0 0.0
        %2086 = vmatprep.subr.mxu0 0.0
        %2087 = vmatpush2.msra.mxu0 0.0
        %2088 = vmatprep.subr.mxu0 0.0
        %2089 = vmatpush2.msra.mxu0 0.0
        %2090 = vmatprep.subr.mxu0 0.0
        %2091 = vmatpush2.msra.mxu0 0.0
        %2092 = vmatprep.subr.mxu0 0.0
        %2093 = vmatpush2.msra.mxu0 0.0
        %2094 = vmatprep.subr.mxu0 0.0
        %2095 = vmatpush2.msra.mxu0 0.0
        %2096 = vmatprep.subr.mxu0 0.0
        %2097 = vmatpush2.msra.mxu0 0.0
        %2098 = vmatprep.subr.mxu0 0.0
        %2099 = vmatpush2.msra.mxu0 0.0
        %2100 = vmatprep.subr.mxu0 0.0
        %2101 = vmatpush2.msra.mxu0 0.0
        %2102 = vmatprep.subr.mxu0 0.0
        %2103 = vmatpush2.msra.mxu0 0.0
        %2104 = vmatprep.mubr.f32.mxu0 0.0
        %2105 = vmatmul.mubr.f32.gmra.mxu0 %v2038
        %v2106 = vpop.f32.mrf.mxu0
        %v2107 = vadd.f32 0.0, %v2106
        %v2108 = vpop.f32.mrf.mxu0
        %2109 = vdwg.mxu0
        %v2111 = vsel %vm1495, %v1662, 0
        %2113 = vmatprep.subr.mxu0 0.0
        %2114 = vmatpush1.msra.mxu0 0.0
        %2115 = vmatprep.subr.mxu0 0.0
        %2116 = vmatpush1.msra.mxu0 0.0
        %2117 = vmatprep.subr.mxu0 0.0
        %2118 = vmatpush1.msra.mxu0 0.0
        %2119 = vmatprep.subr.mxu0 0.0
        %2120 = vmatpush1.msra.mxu0 0.0
        %2121 = vmatprep.subr.mxu0 0.0
        %2122 = vmatpush1.msra.mxu0 0.0
        %2123 = vmatprep.subr.mxu0 0.0
        %2124 = vmatpush1.msra.mxu0 0.0
        %2125 = vmatprep.subr.mxu0 0.0
        %2126 = vmatpush1.msra.mxu0 0.0
        %2127 = vmatprep.subr.mxu0 0.0
        %2128 = vmatpush1.msra.mxu0 0.0
        %2129 = vmatprep.subr.mxu0 0.0
        %2130 = vmatpush1.msra.mxu0 0.0
        %2131 = vmatprep.subr.mxu0 0.0
        %2132 = vmatpush1.msra.mxu0 0.0
        %2133 = vmatprep.subr.mxu0 0.0
        %2134 = vmatpush1.msra.mxu0 0.0
        %2135 = vmatprep.subr.mxu0 0.0
        %2136 = vmatpush1.msra.mxu0 0.0
        %2137 = vmatprep.subr.mxu0 0.0
        %2138 = vmatpush1.msra.mxu0 0.0
        %2139 = vmatprep.subr.mxu0 0.0
        %2140 = vmatpush1.msra.mxu0 0.0
        %2141 = vmatprep.subr.mxu0 0.0
        %2142 = vmatpush1.msra.mxu0 0.0
        %2143 = vmatprep.subr.mxu0 0.0
        %2144 = vmatpush1.msra.mxu0 %v349
        %2145 = vmatprep.subr.mxu0 0.0
        %2146 = vmatpush2.msra.mxu0 0.0
        %2147 = vmatprep.subr.mxu0 0.0
        %2148 = vmatpush2.msra.mxu0 0.0
        %2149 = vmatprep.subr.mxu0 0.0
        %2150 = vmatpush2.msra.mxu0 0.0
        %2151 = vmatprep.subr.mxu0 0.0
        %2152 = vmatpush2.msra.mxu0 0.0
        %2153 = vmatprep.subr.mxu0 0.0
        %2154 = vmatpush2.msra.mxu0 0.0
        %2155 = vmatprep.subr.mxu0 0.0
        %2156 = vmatpush2.msra.mxu0 0.0
        %2157 = vmatprep.subr.mxu0 0.0
        %2158 = vmatpush2.msra.mxu0 0.0
        %2159 = vmatprep.subr.mxu0 0.0
        %2160 = vmatpush2.msra.mxu0 0.0
        %2161 = vmatprep.subr.mxu0 0.0
        %2162 = vmatpush2.msra.mxu0 0.0
        %2163 = vmatprep.subr.mxu0 0.0
        %2164 = vmatpush2.msra.mxu0 0.0
        %2165 = vmatprep.subr.mxu0 0.0
        %2166 = vmatpush2.msra.mxu0 0.0
        %2167 = vmatprep.subr.mxu0 0.0
        %2168 = vmatpush2.msra.mxu0 0.0
        %2169 = vmatprep.subr.mxu0 0.0
        %2170 = vmatpush2.msra.mxu0 0.0
        %2171 = vmatprep.subr.mxu0 0.0
        %2172 = vmatpush2.msra.mxu0 0.0
        %2173 = vmatprep.subr.mxu0 0.0
        %2174 = vmatpush2.msra.mxu0 0.0
        %2175 = vmatprep.subr.mxu0 0.0
        %2176 = vmatpush2.msra.mxu0 0.0
        %2177 = vmatprep.mubr.f32.mxu0 0.0
        %2178 = vmatmul.mubr.f32.gmra.mxu0 %v2111
        %v2179 = vpop.f32.mrf.mxu0
        %v2180 = vadd.f32 0.0, %v2179
        %v2181 = vpop.f32.mrf.mxu0
        %2182 = vdwg.mxu0
        %v2184 = vsel %vm1495, %v1663, 0
        %2186 = vmatprep.subr.mxu0 0.0
        %2187 = vmatpush1.msra.mxu0 0.0
        %2188 = vmatprep.subr.mxu0 0.0
        %2189 = vmatpush1.msra.mxu0 0.0
        %2190 = vmatprep.subr.mxu0 0.0
        %2191 = vmatpush1.msra.mxu0 0.0
        %2192 = vmatprep.subr.mxu0 0.0
        %2193 = vmatpush1.msra.mxu0 0.0
        %2194 = vmatprep.subr.mxu0 0.0
        %2195 = vmatpush1.msra.mxu0 0.0
        %2196 = vmatprep.subr.mxu0 0.0
        %2197 = vmatpush1.msra.mxu0 0.0
        %2198 = vmatprep.subr.mxu0 0.0
        %2199 = vmatpush1.msra.mxu0 0.0
        %2200 = vmatprep.subr.mxu0 0.0
        %2201 = vmatpush1.msra.mxu0 0.0
        %2202 = vmatprep.subr.mxu0 0.0
        %2203 = vmatpush1.msra.mxu0 0.0
        %2204 = vmatprep.subr.mxu0 0.0
        %2205 = vmatpush1.msra.mxu0 0.0
        %2206 = vmatprep.subr.mxu0 0.0
        %2207 = vmatpush1.msra.mxu0 0.0
        %2208 = vmatprep.subr.mxu0 0.0
        %2209 = vmatpush1.msra.mxu0 0.0
        %2210 = vmatprep.subr.mxu0 0.0
        %2211 = vmatpush1.msra.mxu0 0.0
        %2212 = vmatprep.subr.mxu0 0.0
        %2213 = vmatpush1.msra.mxu0 0.0
        %2214 = vmatprep.subr.mxu0 0.0
        %2215 = vmatpush1.msra.mxu0 0.0
        %2216 = vmatprep.subr.mxu0 0.0
        %2217 = vmatpush1.msra.mxu0 %v350
        %2218 = vmatprep.subr.mxu0 0.0
        %2219 = vmatpush2.msra.mxu0 0.0
        %2220 = vmatprep.subr.mxu0 0.0
        %2221 = vmatpush2.msra.mxu0 0.0
        %2222 = vmatprep.subr.mxu0 0.0
        %2223 = vmatpush2.msra.mxu0 0.0
        %2224 = vmatprep.subr.mxu0 0.0
        %2225 = vmatpush2.msra.mxu0 0.0
        %2226 = vmatprep.subr.mxu0 0.0
        %2227 = vmatpush2.msra.mxu0 0.0
        %2228 = vmatprep.subr.mxu0 0.0
        %2229 = vmatpush2.msra.mxu0 0.0
        %2230 = vmatprep.subr.mxu0 0.0
        %2231 = vmatpush2.msra.mxu0 0.0
        %2232 = vmatprep.subr.mxu0 0.0
        %2233 = vmatpush2.msra.mxu0 0.0
        %2234 = vmatprep.subr.mxu0 0.0
        %2235 = vmatpush2.msra.mxu0 0.0
        %2236 = vmatprep.subr.mxu0 0.0
        %2237 = vmatpush2.msra.mxu0 0.0
        %2238 = vmatprep.subr.mxu0 0.0
        %2239 = vmatpush2.msra.mxu0 0.0
        %2240 = vmatprep.subr.mxu0 0.0
        %2241 = vmatpush2.msra.mxu0 0.0
        %2242 = vmatprep.subr.mxu0 0.0
        %2243 = vmatpush2.msra.mxu0 0.0
        %2244 = vmatprep.subr.mxu0 0.0
        %2245 = vmatpush2.msra.mxu0 0.0
        %2246 = vmatprep.subr.mxu0 0.0
        %2247 = vmatpush2.msra.mxu0 0.0
        %2248 = vmatprep.subr.mxu0 0.0
        %2249 = vmatpush2.msra.mxu0 0.0
        %2250 = vmatprep.mubr.f32.mxu0 0.0
        %2251 = vmatmul.mubr.f32.gmra.mxu0 %v2184
        %v2252 = vpop.f32.mrf.mxu0
        %v2253 = vadd.f32 0.0, %v2252
        %v2254 = vpop.f32.mrf.mxu0
        %2255 = vdwg.mxu0
        %v2257 = vsel %vm1495, %v1664, 0
        %2259 = vmatprep.subr.mxu0 0.0
        %2260 = vmatpush1.msra.mxu0 0.0
        %2261 = vmatprep.subr.mxu0 0.0
        %2262 = vmatpush1.msra.mxu0 0.0
        %2263 = vmatprep.subr.mxu0 0.0
        %2264 = vmatpush1.msra.mxu0 0.0
        %2265 = vmatprep.subr.mxu0 0.0
        %2266 = vmatpush1.msra.mxu0 0.0
        %2267 = vmatprep.subr.mxu0 0.0
        %2268 = vmatpush1.msra.mxu0 0.0
        %2269 = vmatprep.subr.mxu0 0.0
        %2270 = vmatpush1.msra.mxu0 0.0
        %2271 = vmatprep.subr.mxu0 0.0
        %2272 = vmatpush1.msra.mxu0 0.0
        %2273 = vmatprep.subr.mxu0 0.0
        %2274 = vmatpush1.msra.mxu0 0.0
        %2275 = vmatprep.subr.mxu0 0.0
        %2276 = vmatpush1.msra.mxu0 0.0
        %2277 = vmatprep.subr.mxu0 0.0
        %2278 = vmatpush1.msra.mxu0 0.0
        %2279 = vmatprep.subr.mxu0 0.0
        %2280 = vmatpush1.msra.mxu0 0.0
        %2281 = vmatprep.subr.mxu0 0.0
        %2282 = vmatpush1.msra.mxu0 0.0
        %2283 = vmatprep.subr.mxu0 0.0
        %2284 = vmatpush1.msra.mxu0 0.0
        %2285 = vmatprep.subr.mxu0 0.0
        %2286 = vmatpush1.msra.mxu0 0.0
        %2287 = vmatprep.subr.mxu0 0.0
        %2288 = vmatpush1.msra.mxu0 0.0
        %2289 = vmatprep.subr.mxu0 0.0
        %2290 = vmatpush1.msra.mxu0 %v351
        %2291 = vmatprep.subr.mxu0 0.0
        %2292 = vmatpush2.msra.mxu0 0.0
        %2293 = vmatprep.subr.mxu0 0.0
        %2294 = vmatpush2.msra.mxu0 0.0
        %2295 = vmatprep.subr.mxu0 0.0
        %2296 = vmatpush2.msra.mxu0 0.0
        %2297 = vmatprep.subr.mxu0 0.0
        %2298 = vmatpush2.msra.mxu0 0.0
        %2299 = vmatprep.subr.mxu0 0.0
        %2300 = vmatpush2.msra.mxu0 0.0
        %2301 = vmatprep.subr.mxu0 0.0
        %2302 = vmatpush2.msra.mxu0 0.0
        %2303 = vmatprep.subr.mxu0 0.0
        %2304 = vmatpush2.msra.mxu0 0.0
        %2305 = vmatprep.subr.mxu0 0.0
        %2306 = vmatpush2.msra.mxu0 0.0
        %2307 = vmatprep.subr.mxu0 0.0
        %2308 = vmatpush2.msra.mxu0 0.0
        %2309 = vmatprep.subr.mxu0 0.0
        %2310 = vmatpush2.msra.mxu0 0.0
        %2311 = vmatprep.subr.mxu0 0.0
        %2312 = vmatpush2.msra.mxu0 0.0
        %2313 = vmatprep.subr.mxu0 0.0
        %2314 = vmatpush2.msra.mxu0 0.0
        %2315 = vmatprep.subr.mxu0 0.0
        %2316 = vmatpush2.msra.mxu0 0.0
        %2317 = vmatprep.subr.mxu0 0.0
        %2318 = vmatpush2.msra.mxu0 0.0
        %2319 = vmatprep.subr.mxu0 0.0
        %2320 = vmatpush2.msra.mxu0 0.0
        %2321 = vmatprep.subr.mxu0 0.0
        %2322 = vmatpush2.msra.mxu0 0.0
        %2323 = vmatprep.mubr.f32.mxu0 0.0
        %2324 = vmatmul.mubr.f32.gmra.mxu0 %v2257
        %v2325 = vpop.f32.mrf.mxu0
        %v2326 = vadd.f32 0.0, %v2325
        %v2327 = vpop.f32.mrf.mxu0
        %2328 = vdwg.mxu0
        %v2330 = vsel %vm1495, %v1665, 0
        %2332 = vmatprep.subr.mxu0 0.0
        %2333 = vmatpush1.msra.mxu0 0.0
        %2334 = vmatprep.subr.mxu0 0.0
        %2335 = vmatpush1.msra.mxu0 0.0
        %2336 = vmatprep.subr.mxu0 0.0
        %2337 = vmatpush1.msra.mxu0 0.0
        %2338 = vmatprep.subr.mxu0 0.0
        %2339 = vmatpush1.msra.mxu0 0.0
        %2340 = vmatprep.subr.mxu0 0.0
        %2341 = vmatpush1.msra.mxu0 0.0
        %2342 = vmatprep.subr.mxu0 0.0
        %2343 = vmatpush1.msra.mxu0 0.0
        %2344 = vmatprep.subr.mxu0 0.0
        %2345 = vmatpush1.msra.mxu0 0.0
        %2346 = vmatprep.subr.mxu0 0.0
        %2347 = vmatpush1.msra.mxu0 0.0
        %2348 = vmatprep.subr.mxu0 0.0
        %2349 = vmatpush1.msra.mxu0 0.0
        %2350 = vmatprep.subr.mxu0 0.0
        %2351 = vmatpush1.msra.mxu0 0.0
        %2352 = vmatprep.subr.mxu0 0.0
        %2353 = vmatpush1.msra.mxu0 0.0
        %2354 = vmatprep.subr.mxu0 0.0
        %2355 = vmatpush1.msra.mxu0 0.0
        %2356 = vmatprep.subr.mxu0 0.0
        %2357 = vmatpush1.msra.mxu0 0.0
        %2358 = vmatprep.subr.mxu0 0.0
        %2359 = vmatpush1.msra.mxu0 0.0
        %2360 = vmatprep.subr.mxu0 0.0
        %2361 = vmatpush1.msra.mxu0 0.0
        %2362 = vmatprep.subr.mxu0 0.0
        %2363 = vmatpush1.msra.mxu0 %v352
        %2364 = vmatprep.subr.mxu0 0.0
        %2365 = vmatpush2.msra.mxu0 0.0
        %2366 = vmatprep.subr.mxu0 0.0
        %2367 = vmatpush2.msra.mxu0 0.0
        %2368 = vmatprep.subr.mxu0 0.0
        %2369 = vmatpush2.msra.mxu0 0.0
        %2370 = vmatprep.subr.mxu0 0.0
        %2371 = vmatpush2.msra.mxu0 0.0
        %2372 = vmatprep.subr.mxu0 0.0
        %2373 = vmatpush2.msra.mxu0 0.0
        %2374 = vmatprep.subr.mxu0 0.0
        %2375 = vmatpush2.msra.mxu0 0.0
        %2376 = vmatprep.subr.mxu0 0.0
        %2377 = vmatpush2.msra.mxu0 0.0
        %2378 = vmatprep.subr.mxu0 0.0
        %2379 = vmatpush2.msra.mxu0 0.0
        %2380 = vmatprep.subr.mxu0 0.0
        %2381 = vmatpush2.msra.mxu0 0.0
        %2382 = vmatprep.subr.mxu0 0.0
        %2383 = vmatpush2.msra.mxu0 0.0
        %2384 = vmatprep.subr.mxu0 0.0
        %2385 = vmatpush2.msra.mxu0 0.0
        %2386 = vmatprep.subr.mxu0 0.0
        %2387 = vmatpush2.msra.mxu0 0.0
        %2388 = vmatprep.subr.mxu0 0.0
        %2389 = vmatpush2.msra.mxu0 0.0
        %2390 = vmatprep.subr.mxu0 0.0
        %2391 = vmatpush2.msra.mxu0 0.0
        %2392 = vmatprep.subr.mxu0 0.0
        %2393 = vmatpush2.msra.mxu0 0.0
        %2394 = vmatprep.subr.mxu0 0.0
        %2395 = vmatpush2.msra.mxu0 0.0
        %2396 = vmatprep.mubr.f32.mxu0 0.0
        %2397 = vmatmul.mubr.f32.gmra.mxu0 %v2330
        %v2398 = vpop.f32.mrf.mxu0
        %v2399 = vadd.f32 0.0, %v2398
        %v2400 = vpop.f32.mrf.mxu0
        %2401 = vdwg.mxu0
        %v2403 = vsel %vm1495, %v1666, 0
        %2405 = vmatprep.subr.mxu0 0.0
        %2406 = vmatpush1.msra.mxu0 0.0
        %2407 = vmatprep.subr.mxu0 0.0
        %2408 = vmatpush1.msra.mxu0 0.0
        %2409 = vmatprep.subr.mxu0 0.0
        %2410 = vmatpush1.msra.mxu0 0.0
        %2411 = vmatprep.subr.mxu0 0.0
        %2412 = vmatpush1.msra.mxu0 0.0
        %2413 = vmatprep.subr.mxu0 0.0
        %2414 = vmatpush1.msra.mxu0 0.0
        %2415 = vmatprep.subr.mxu0 0.0
        %2416 = vmatpush1.msra.mxu0 0.0
        %2417 = vmatprep.subr.mxu0 0.0
        %2418 = vmatpush1.msra.mxu0 0.0
        %2419 = vmatprep.subr.mxu0 0.0
        %2420 = vmatpush1.msra.mxu0 0.0
        %2421 = vmatprep.subr.mxu0 0.0
        %2422 = vmatpush1.msra.mxu0 0.0
        %2423 = vmatprep.subr.mxu0 0.0
        %2424 = vmatpush1.msra.mxu0 0.0
        %2425 = vmatprep.subr.mxu0 0.0
        %2426 = vmatpush1.msra.mxu0 0.0
        %2427 = vmatprep.subr.mxu0 0.0
        %2428 = vmatpush1.msra.mxu0 0.0
        %2429 = vmatprep.subr.mxu0 0.0
        %2430 = vmatpush1.msra.mxu0 0.0
        %2431 = vmatprep.subr.mxu0 0.0
        %2432 = vmatpush1.msra.mxu0 0.0
        %2433 = vmatprep.subr.mxu0 0.0
        %2434 = vmatpush1.msra.mxu0 0.0
        %2435 = vmatprep.subr.mxu0 0.0
        %2436 = vmatpush1.msra.mxu0 %v353
        %2437 = vmatprep.subr.mxu0 0.0
        %2438 = vmatpush2.msra.mxu0 0.0
        %2439 = vmatprep.subr.mxu0 0.0
        %2440 = vmatpush2.msra.mxu0 0.0
        %2441 = vmatprep.subr.mxu0 0.0
        %2442 = vmatpush2.msra.mxu0 0.0
        %2443 = vmatprep.subr.mxu0 0.0
        %2444 = vmatpush2.msra.mxu0 0.0
        %2445 = vmatprep.subr.mxu0 0.0
        %2446 = vmatpush2.msra.mxu0 0.0
        %2447 = vmatprep.subr.mxu0 0.0
        %2448 = vmatpush2.msra.mxu0 0.0
        %2449 = vmatprep.subr.mxu0 0.0
        %2450 = vmatpush2.msra.mxu0 0.0
        %2451 = vmatprep.subr.mxu0 0.0
        %2452 = vmatpush2.msra.mxu0 0.0
        %2453 = vmatprep.subr.mxu0 0.0
        %2454 = vmatpush2.msra.mxu0 0.0
        %2455 = vmatprep.subr.mxu0 0.0
        %2456 = vmatpush2.msra.mxu0 0.0
        %2457 = vmatprep.subr.mxu0 0.0
        %2458 = vmatpush2.msra.mxu0 0.0
        %2459 = vmatprep.subr.mxu0 0.0
        %2460 = vmatpush2.msra.mxu0 0.0
        %2461 = vmatprep.subr.mxu0 0.0
        %2462 = vmatpush2.msra.mxu0 0.0
        %2463 = vmatprep.subr.mxu0 0.0
        %2464 = vmatpush2.msra.mxu0 0.0
        %2465 = vmatprep.subr.mxu0 0.0
        %2466 = vmatpush2.msra.mxu0 0.0
        %2467 = vmatprep.subr.mxu0 0.0
        %2468 = vmatpush2.msra.mxu0 0.0
        %2469 = vmatprep.mubr.f32.mxu0 0.0
        %2470 = vmatmul.mubr.f32.gmra.mxu0 %v2403
        %v2471 = vpop.f32.mrf.mxu0
        %v2472 = vadd.f32 0.0, %v2471
        %v2473 = vpop.f32.mrf.mxu0
        %2474 = vdwg.mxu0
        %v2476 = vsel %vm1495, %v1667, 0
        %2478 = vmatprep.subr.mxu0 0.0
        %2479 = vmatpush1.msra.mxu0 0.0
        %2480 = vmatprep.subr.mxu0 0.0
        %2481 = vmatpush1.msra.mxu0 0.0
        %2482 = vmatprep.subr.mxu0 0.0
        %2483 = vmatpush1.msra.mxu0 0.0
        %2484 = vmatprep.subr.mxu0 0.0
        %2485 = vmatpush1.msra.mxu0 0.0
        %2486 = vmatprep.subr.mxu0 0.0
        %2487 = vmatpush1.msra.mxu0 0.0
        %2488 = vmatprep.subr.mxu0 0.0
        %2489 = vmatpush1.msra.mxu0 0.0
        %2490 = vmatprep.subr.mxu0 0.0
        %2491 = vmatpush1.msra.mxu0 0.0
        %2492 = vmatprep.subr.mxu0 0.0
        %2493 = vmatpush1.msra.mxu0 0.0
        %2494 = vmatprep.subr.mxu0 0.0
        %2495 = vmatpush1.msra.mxu0 0.0
        %2496 = vmatprep.subr.mxu0 0.0
        %2497 = vmatpush1.msra.mxu0 0.0
        %2498 = vmatprep.subr.mxu0 0.0
        %2499 = vmatpush1.msra.mxu0 0.0
        %2500 = vmatprep.subr.mxu0 0.0
        %2501 = vmatpush1.msra.mxu0 0.0
        %2502 = vmatprep.subr.mxu0 0.0
        %2503 = vmatpush1.msra.mxu0 0.0
        %2504 = vmatprep.subr.mxu0 0.0
        %2505 = vmatpush1.msra.mxu0 0.0
        %2506 = vmatprep.subr.mxu0 0.0
        %2507 = vmatpush1.msra.mxu0 0.0
        %2508 = vmatprep.subr.mxu0 0.0
        %2509 = vmatpush1.msra.mxu0 %v354
        %2510 = vmatprep.subr.mxu0 0.0
        %2511 = vmatpush2.msra.mxu0 0.0
        %2512 = vmatprep.subr.mxu0 0.0
        %2513 = vmatpush2.msra.mxu0 0.0
        %2514 = vmatprep.subr.mxu0 0.0
        %2515 = vmatpush2.msra.mxu0 0.0
        %2516 = vmatprep.subr.mxu0 0.0
        %2517 = vmatpush2.msra.mxu0 0.0
        %2518 = vmatprep.subr.mxu0 0.0
        %2519 = vmatpush2.msra.mxu0 0.0
        %2520 = vmatprep.subr.mxu0 0.0
        %2521 = vmatpush2.msra.mxu0 0.0
        %2522 = vmatprep.subr.mxu0 0.0
        %2523 = vmatpush2.msra.mxu0 0.0
        %2524 = vmatprep.subr.mxu0 0.0
        %2525 = vmatpush2.msra.mxu0 0.0
        %2526 = vmatprep.subr.mxu0 0.0
        %2527 = vmatpush2.msra.mxu0 0.0
        %2528 = vmatprep.subr.mxu0 0.0
        %2529 = vmatpush2.msra.mxu0 0.0
        %2530 = vmatprep.subr.mxu0 0.0
        %2531 = vmatpush2.msra.mxu0 0.0
        %2532 = vmatprep.subr.mxu0 0.0
        %2533 = vmatpush2.msra.mxu0 0.0
        %2534 = vmatprep.subr.mxu0 0.0
        %2535 = vmatpush2.msra.mxu0 0.0
        %2536 = vmatprep.subr.mxu0 0.0
        %2537 = vmatpush2.msra.mxu0 0.0
        %2538 = vmatprep.subr.mxu0 0.0
        %2539 = vmatpush2.msra.mxu0 0.0
        %2540 = vmatprep.subr.mxu0 0.0
        %2541 = vmatpush2.msra.mxu0 0.0
        %2542 = vmatprep.mubr.f32.mxu0 0.0
        %2543 = vmatmul.mubr.f32.gmra.mxu0 %v2476
        %v2544 = vpop.f32.mrf.mxu0
        %v2545 = vadd.f32 0.0, %v2544
        %v2546 = vpop.f32.mrf.mxu0
        %2547 = vdwg.mxu0
        %v2549 = vsel %vm1495, %v1668, 0
        %2551 = vmatprep.subr.mxu0 0.0
        %2552 = vmatpush1.msra.mxu0 0.0
        %2553 = vmatprep.subr.mxu0 0.0
        %2554 = vmatpush1.msra.mxu0 0.0
        %2555 = vmatprep.subr.mxu0 0.0
        %2556 = vmatpush1.msra.mxu0 0.0
        %2557 = vmatprep.subr.mxu0 0.0
        %2558 = vmatpush1.msra.mxu0 0.0
        %2559 = vmatprep.subr.mxu0 0.0
        %2560 = vmatpush1.msra.mxu0 0.0
        %2561 = vmatprep.subr.mxu0 0.0
        %2562 = vmatpush1.msra.mxu0 0.0
        %2563 = vmatprep.subr.mxu0 0.0
        %2564 = vmatpush1.msra.mxu0 0.0
        %2565 = vmatprep.subr.mxu0 0.0
        %2566 = vmatpush1.msra.mxu0 0.0
        %2567 = vmatprep.subr.mxu0 0.0
        %2568 = vmatpush1.msra.mxu0 0.0
        %2569 = vmatprep.subr.mxu0 0.0
        %2570 = vmatpush1.msra.mxu0 0.0
        %2571 = vmatprep.subr.mxu0 0.0
        %2572 = vmatpush1.msra.mxu0 0.0
        %2573 = vmatprep.subr.mxu0 0.0
        %2574 = vmatpush1.msra.mxu0 0.0
        %2575 = vmatprep.subr.mxu0 0.0
        %2576 = vmatpush1.msra.mxu0 0.0
        %2577 = vmatprep.subr.mxu0 0.0
        %2578 = vmatpush1.msra.mxu0 0.0
        %2579 = vmatprep.subr.mxu0 0.0
        %2580 = vmatpush1.msra.mxu0 0.0
        %2581 = vmatprep.subr.mxu0 0.0
        %2582 = vmatpush1.msra.mxu0 %v355
        %2583 = vmatprep.subr.mxu0 0.0
        %2584 = vmatpush2.msra.mxu0 0.0
        %2585 = vmatprep.subr.mxu0 0.0
        %2586 = vmatpush2.msra.mxu0 0.0
        %2587 = vmatprep.subr.mxu0 0.0
        %2588 = vmatpush2.msra.mxu0 0.0
        %2589 = vmatprep.subr.mxu0 0.0
        %2590 = vmatpush2.msra.mxu0 0.0
        %2591 = vmatprep.subr.mxu0 0.0
        %2592 = vmatpush2.msra.mxu0 0.0
        %2593 = vmatprep.subr.mxu0 0.0
        %2594 = vmatpush2.msra.mxu0 0.0
        %2595 = vmatprep.subr.mxu0 0.0
        %2596 = vmatpush2.msra.mxu0 0.0
        %2597 = vmatprep.subr.mxu0 0.0
        %2598 = vmatpush2.msra.mxu0 0.0
        %2599 = vmatprep.subr.mxu0 0.0
        %2600 = vmatpush2.msra.mxu0 0.0
        %2601 = vmatprep.subr.mxu0 0.0
        %2602 = vmatpush2.msra.mxu0 0.0
        %2603 = vmatprep.subr.mxu0 0.0
        %2604 = vmatpush2.msra.mxu0 0.0
        %2605 = vmatprep.subr.mxu0 0.0
        %2606 = vmatpush2.msra.mxu0 0.0
        %2607 = vmatprep.subr.mxu0 0.0
        %2608 = vmatpush2.msra.mxu0 0.0
        %2609 = vmatprep.subr.mxu0 0.0
        %2610 = vmatpush2.msra.mxu0 0.0
        %2611 = vmatprep.subr.mxu0 0.0
        %2612 = vmatpush2.msra.mxu0 0.0
        %2613 = vmatprep.subr.mxu0 0.0
        %2614 = vmatpush2.msra.mxu0 0.0
        %2615 = vmatprep.mubr.f32.mxu0 0.0
        %2616 = vmatmul.mubr.f32.gmra.mxu0 %v2549
        %v2617 = vpop.f32.mrf.mxu0
        %v2618 = vadd.f32 0.0, %v2617
        %v2619 = vpop.f32.mrf.mxu0
        %2620 = vdwg.mxu0
        %v2622 = vsel %vm1495, %v1669, 0
        %2624 = vmatprep.subr.mxu0 0.0
        %2625 = vmatpush1.msra.mxu0 0.0
        %2626 = vmatprep.subr.mxu0 0.0
        %2627 = vmatpush1.msra.mxu0 0.0
        %2628 = vmatprep.subr.mxu0 0.0
        %2629 = vmatpush1.msra.mxu0 0.0
        %2630 = vmatprep.subr.mxu0 0.0
        %2631 = vmatpush1.msra.mxu0 0.0
        %2632 = vmatprep.subr.mxu0 0.0
        %2633 = vmatpush1.msra.mxu0 0.0
        %2634 = vmatprep.subr.mxu0 0.0
        %2635 = vmatpush1.msra.mxu0 0.0
        %2636 = vmatprep.subr.mxu0 0.0
        %2637 = vmatpush1.msra.mxu0 0.0
        %2638 = vmatprep.subr.mxu0 0.0
        %2639 = vmatpush1.msra.mxu0 0.0
        %2640 = vmatprep.subr.mxu0 0.0
        %2641 = vmatpush1.msra.mxu0 0.0
        %2642 = vmatprep.subr.mxu0 0.0
        %2643 = vmatpush1.msra.mxu0 0.0
        %2644 = vmatprep.subr.mxu0 0.0
        %2645 = vmatpush1.msra.mxu0 0.0
        %2646 = vmatprep.subr.mxu0 0.0
        %2647 = vmatpush1.msra.mxu0 0.0
        %2648 = vmatprep.subr.mxu0 0.0
        %2649 = vmatpush1.msra.mxu0 0.0
        %2650 = vmatprep.subr.mxu0 0.0
        %2651 = vmatpush1.msra.mxu0 0.0
        %2652 = vmatprep.subr.mxu0 0.0
        %2653 = vmatpush1.msra.mxu0 0.0
        %2654 = vmatprep.subr.mxu0 0.0
        %2655 = vmatpush1.msra.mxu0 %v356
        %2656 = vmatprep.subr.mxu0 0.0
        %2657 = vmatpush2.msra.mxu0 0.0
        %2658 = vmatprep.subr.mxu0 0.0
        %2659 = vmatpush2.msra.mxu0 0.0
        %2660 = vmatprep.subr.mxu0 0.0
        %2661 = vmatpush2.msra.mxu0 0.0
        %2662 = vmatprep.subr.mxu0 0.0
        %2663 = vmatpush2.msra.mxu0 0.0
        %2664 = vmatprep.subr.mxu0 0.0
        %2665 = vmatpush2.msra.mxu0 0.0
        %2666 = vmatprep.subr.mxu0 0.0
        %2667 = vmatpush2.msra.mxu0 0.0
        %2668 = vmatprep.subr.mxu0 0.0
        %2669 = vmatpush2.msra.mxu0 0.0
        %2670 = vmatprep.subr.mxu0 0.0
        %2671 = vmatpush2.msra.mxu0 0.0
        %2672 = vmatprep.subr.mxu0 0.0
        %2673 = vmatpush2.msra.mxu0 0.0
        %2674 = vmatprep.subr.mxu0 0.0
        %2675 = vmatpush2.msra.mxu0 0.0
        %2676 = vmatprep.subr.mxu0 0.0
        %2677 = vmatpush2.msra.mxu0 0.0
        %2678 = vmatprep.subr.mxu0 0.0
        %2679 = vmatpush2.msra.mxu0 0.0
        %2680 = vmatprep.subr.mxu0 0.0
        %2681 = vmatpush2.msra.mxu0 0.0
        %2682 = vmatprep.subr.mxu0 0.0
        %2683 = vmatpush2.msra.mxu0 0.0
        %2684 = vmatprep.subr.mxu0 0.0
        %2685 = vmatpush2.msra.mxu0 0.0
        %2686 = vmatprep.subr.mxu0 0.0
        %2687 = vmatpush2.msra.mxu0 0.0
        %2688 = vmatprep.mubr.f32.mxu0 0.0
        %2689 = vmatmul.mubr.f32.gmra.mxu0 %v2622
        %v2690 = vpop.f32.mrf.mxu0
        %v2691 = vadd.f32 0.0, %v2690
        %v2692 = vpop.f32.mrf.mxu0
        %2693 = vdwg.mxu0
        %v2695 = vsel %vm1495, %v1670, 0
        %2697 = vmatprep.subr.mxu0 0.0
        %2698 = vmatpush1.msra.mxu0 0.0
        %2699 = vmatprep.subr.mxu0 0.0
        %2700 = vmatpush1.msra.mxu0 0.0
        %2701 = vmatprep.subr.mxu0 0.0
        %2702 = vmatpush1.msra.mxu0 0.0
        %2703 = vmatprep.subr.mxu0 0.0
        %2704 = vmatpush1.msra.mxu0 0.0
        %2705 = vmatprep.subr.mxu0 0.0
        %2706 = vmatpush1.msra.mxu0 0.0
        %2707 = vmatprep.subr.mxu0 0.0
        %2708 = vmatpush1.msra.mxu0 0.0
        %2709 = vmatprep.subr.mxu0 0.0
        %2710 = vmatpush1.msra.mxu0 0.0
        %2711 = vmatprep.subr.mxu0 0.0
        %2712 = vmatpush1.msra.mxu0 0.0
        %2713 = vmatprep.subr.mxu0 0.0
        %2714 = vmatpush1.msra.mxu0 0.0
        %2715 = vmatprep.subr.mxu0 0.0
        %2716 = vmatpush1.msra.mxu0 0.0
        %2717 = vmatprep.subr.mxu0 0.0
        %2718 = vmatpush1.msra.mxu0 0.0
        %2719 = vmatprep.subr.mxu0 0.0
        %2720 = vmatpush1.msra.mxu0 0.0
        %2721 = vmatprep.subr.mxu0 0.0
        %2722 = vmatpush1.msra.mxu0 0.0
        %2723 = vmatprep.subr.mxu0 0.0
        %2724 = vmatpush1.msra.mxu0 0.0
        %2725 = vmatprep.subr.mxu0 0.0
        %2726 = vmatpush1.msra.mxu0 0.0
        %2727 = vmatprep.subr.mxu0 0.0
        %2728 = vmatpush1.msra.mxu0 %v357
        %2729 = vmatprep.subr.mxu0 0.0
        %2730 = vmatpush2.msra.mxu0 0.0
        %2731 = vmatprep.subr.mxu0 0.0
        %2732 = vmatpush2.msra.mxu0 0.0
        %2733 = vmatprep.subr.mxu0 0.0
        %2734 = vmatpush2.msra.mxu0 0.0
        %2735 = vmatprep.subr.mxu0 0.0
        %2736 = vmatpush2.msra.mxu0 0.0
        %2737 = vmatprep.subr.mxu0 0.0
        %2738 = vmatpush2.msra.mxu0 0.0
        %2739 = vmatprep.subr.mxu0 0.0
        %2740 = vmatpush2.msra.mxu0 0.0
        %2741 = vmatprep.subr.mxu0 0.0
        %2742 = vmatpush2.msra.mxu0 0.0
        %2743 = vmatprep.subr.mxu0 0.0
        %2744 = vmatpush2.msra.mxu0 0.0
        %2745 = vmatprep.subr.mxu0 0.0
        %2746 = vmatpush2.msra.mxu0 0.0
        %2747 = vmatprep.subr.mxu0 0.0
        %2748 = vmatpush2.msra.mxu0 0.0
        %2749 = vmatprep.subr.mxu0 0.0
        %2750 = vmatpush2.msra.mxu0 0.0
        %2751 = vmatprep.subr.mxu0 0.0
        %2752 = vmatpush2.msra.mxu0 0.0
        %2753 = vmatprep.subr.mxu0 0.0
        %2754 = vmatpush2.msra.mxu0 0.0
        %2755 = vmatprep.subr.mxu0 0.0
        %2756 = vmatpush2.msra.mxu0 0.0
        %2757 = vmatprep.subr.mxu0 0.0
        %2758 = vmatpush2.msra.mxu0 0.0
        %2759 = vmatprep.subr.mxu0 0.0
        %2760 = vmatpush2.msra.mxu0 0.0
        %2761 = vmatprep.mubr.f32.mxu0 0.0
        %2762 = vmatmul.mubr.f32.gmra.mxu0 %v2695
        %v2763 = vpop.f32.mrf.mxu0
        %v2764 = vadd.f32 0.0, %v2763
        %v2765 = vpop.f32.mrf.mxu0
        %2766 = vdwg.mxu0
        %v2768 = vsel %vm1495, %v1671, 0
        %2770 = vmatprep.subr.mxu0 0.0
        %2771 = vmatpush1.msra.mxu0 0.0
        %2772 = vmatprep.subr.mxu0 0.0
        %2773 = vmatpush1.msra.mxu0 0.0
        %2774 = vmatprep.subr.mxu0 0.0
        %2775 = vmatpush1.msra.mxu0 0.0
        %2776 = vmatprep.subr.mxu0 0.0
        %2777 = vmatpush1.msra.mxu0 0.0
        %2778 = vmatprep.subr.mxu0 0.0
        %2779 = vmatpush1.msra.mxu0 0.0
        %2780 = vmatprep.subr.mxu0 0.0
        %2781 = vmatpush1.msra.mxu0 0.0
        %2782 = vmatprep.subr.mxu0 0.0
        %2783 = vmatpush1.msra.mxu0 0.0
        %2784 = vmatprep.subr.mxu0 0.0
        %2785 = vmatpush1.msra.mxu0 0.0
        %2786 = vmatprep.subr.mxu0 0.0
        %2787 = vmatpush1.msra.mxu0 0.0
        %2788 = vmatprep.subr.mxu0 0.0
        %2789 = vmatpush1.msra.mxu0 0.0
        %2790 = vmatprep.subr.mxu0 0.0
        %2791 = vmatpush1.msra.mxu0 0.0
        %2792 = vmatprep.subr.mxu0 0.0
        %2793 = vmatpush1.msra.mxu0 0.0
        %2794 = vmatprep.subr.mxu0 0.0
        %2795 = vmatpush1.msra.mxu0 0.0
        %2796 = vmatprep.subr.mxu0 0.0
        %2797 = vmatpush1.msra.mxu0 0.0
        %2798 = vmatprep.subr.mxu0 0.0
        %2799 = vmatpush1.msra.mxu0 0.0
        %2800 = vmatprep.subr.mxu0 0.0
        %2801 = vmatpush1.msra.mxu0 %v358
        %2802 = vmatprep.subr.mxu0 0.0
        %2803 = vmatpush2.msra.mxu0 0.0
        %2804 = vmatprep.subr.mxu0 0.0
        %2805 = vmatpush2.msra.mxu0 0.0
        %2806 = vmatprep.subr.mxu0 0.0
        %2807 = vmatpush2.msra.mxu0 0.0
        %2808 = vmatprep.subr.mxu0 0.0
        %2809 = vmatpush2.msra.mxu0 0.0
        %2810 = vmatprep.subr.mxu0 0.0
        %2811 = vmatpush2.msra.mxu0 0.0
        %2812 = vmatprep.subr.mxu0 0.0
        %2813 = vmatpush2.msra.mxu0 0.0
        %2814 = vmatprep.subr.mxu0 0.0
        %2815 = vmatpush2.msra.mxu0 0.0
        %2816 = vmatprep.subr.mxu0 0.0
        %2817 = vmatpush2.msra.mxu0 0.0
        %2818 = vmatprep.subr.mxu0 0.0
        %2819 = vmatpush2.msra.mxu0 0.0
        %2820 = vmatprep.subr.mxu0 0.0
        %2821 = vmatpush2.msra.mxu0 0.0
        %2822 = vmatprep.subr.mxu0 0.0
        %2823 = vmatpush2.msra.mxu0 0.0
        %2824 = vmatprep.subr.mxu0 0.0
        %2825 = vmatpush2.msra.mxu0 0.0
        %2826 = vmatprep.subr.mxu0 0.0
        %2827 = vmatpush2.msra.mxu0 0.0
        %2828 = vmatprep.subr.mxu0 0.0
        %2829 = vmatpush2.msra.mxu0 0.0
        %2830 = vmatprep.subr.mxu0 0.0
        %2831 = vmatpush2.msra.mxu0 0.0
        %2832 = vmatprep.subr.mxu0 0.0
        %2833 = vmatpush2.msra.mxu0 0.0
        %2834 = vmatprep.mubr.f32.mxu0 0.0
        %2835 = vmatmul.mubr.f32.gmra.mxu0 %v2768
        %v2836 = vpop.f32.mrf.mxu0
        %v2837 = vadd.f32 0.0, %v2836
        %v2838 = vpop.f32.mrf.mxu0
        %2839 = vdwg.mxu0
        %2840 = vst [vmem:[%s293] sm:$0xff] %v1742
        %2841 = vst [vmem:[%s293 + $0x8] sm:$0xff] %v1815
        %2842 = vst [vmem:[%s293 + $0x10] sm:$0xff] %v1888
        %2843 = vst [vmem:[%s293 + $0x18] sm:$0xff] %v1961
        %2844 = vst [vmem:[%s293 + $0x20] sm:$0xff] %v2034
        %2845 = vst [vmem:[%s293 + $0x28] sm:$0xff] %v2107
        %2846 = vst [vmem:[%s293 + $0x30] sm:$0xff] %v2180
        %2847 = vst [vmem:[%s293 + $0x38] sm:$0xff] %v2253
        %2848 = vst [vmem:[%s293 + $0x40] sm:$0xff] %v2326
        %2849 = vst [vmem:[%s293 + $0x48] sm:$0xff] %v2399
        %2850 = vst [vmem:[%s293 + $0x50] sm:$0xff] %v2472
        %2851 = vst [vmem:[%s293 + $0x58] sm:$0xff] %v2545
        %2852 = vst [vmem:[%s293 + $0x60] sm:$0xff] %v2618
        %2853 = vst [vmem:[%s293 + $0x68] sm:$0xff] %v2691
        %2854 = vst [vmem:[%s293 + $0x70] sm:$0xff] %v2764
        %2855 = vst [vmem:[%s293 + $0x78] sm:$0xff] %v2837
        %2856 = vst.msk [vmem:[%s309] sm:$0xff] %vm1495, %v1656
        %2857 = vst.msk [vmem:[%s309 + $0x8] sm:$0xff] %vm1495, %v1657
        %2858 = vst.msk [vmem:[%s309 + $0x10] sm:$0xff] %vm1495, %v1658
        %2859 = vst.msk [vmem:[%s309 + $0x18] sm:$0xff] %vm1495, %v1659
        %2860 = vst.msk [vmem:[%s309 + $0x20] sm:$0xff] %vm1495, %v1660
        %2861 = vst.msk [vmem:[%s309 + $0x28] sm:$0xff] %vm1495, %v1661
        %2862 = vst.msk [vmem:[%s309 + $0x30] sm:$0xff] %vm1495, %v1662
        %2863 = vst.msk [vmem:[%s309 + $0x38] sm:$0xff] %vm1495, %v1663
        %2864 = vst.msk [vmem:[%s309 + $0x40] sm:$0xff] %vm1495, %v1664
        %2865 = vst.msk [vmem:[%s309 + $0x48] sm:$0xff] %vm1495, %v1665
        %2866 = vst.msk [vmem:[%s309 + $0x50] sm:$0xff] %vm1495, %v1666
        %2867 = vst.msk [vmem:[%s309 + $0x58] sm:$0xff] %vm1495, %v1667
        %2868 = vst.msk [vmem:[%s309 + $0x60] sm:$0xff] %vm1495, %v1668
        %2869 = vst.msk [vmem:[%s309 + $0x68] sm:$0xff] %vm1495, %v1669
        %2870 = vst.msk [vmem:[%s309 + $0x70] sm:$0xff] %vm1495, %v1670
        %2871 = vst.msk [vmem:[%s309 + $0x78] sm:$0xff] %vm1495, %v1671
        %s2872 = sand.u32 %s111, 1
        %s2873 = scalar_lea.sflag [#allocation4], %s2872
        %s2874 = sand.u32 %s111, 1
        %s2875 = smul.addr %s2874, 128
        %s2876 = scalar_lea.vmem [#allocation8], %s2875
        %s2877 = smul.u32 16, %s25
        %p2878 = scmp.lt.s32.totalorder %s2877, 31
        %s2879 = scalar_select %p2878, %s2877, 31
        %s2880 = smul.addr %s2879, 8
        %s2881 = scalar_lea.vmem %s4, %s2880
        // Predicated region
        $region45: #{tpu_custom_call.1} parent=31 // pred_check
          %p2882 = pneg %p121
        $region46: #{tpu_custom_call.1} parent=31 // pred_check_branch
          %2884 = sbr.rel (%p2882) target = $region48
        $region47: #{tpu_custom_call.1} parent=31 // pred_region
          %s2885 = smul.u32 16, %s25
          %s2887 = ssub.s32 2048, 2048
          %2888 = vsyncadd %s2873, %s2887
          %s2889 = smul.addr %s2885, 128
          %s2890 = scalar_lea.hbm %s3, %s2889
          %s2891 = sshll.u32 %s2876, 4
          %s2892 = int_to_ptr.vmem [resolvable:$true] %s2891
          %2897 = dma.vmem_to_hbm [thread:$0]  %s2892, 2048, %s2890, %s2873, 128, 128, 8
        $region48: #{tpu_custom_call.1} parent=31 // pred_fallthru
          _
        // Predicated region
        $region49: #{tpu_custom_call.1} parent=31 // pred_check
          %p2898 = pneg %p147
        $region50: #{tpu_custom_call.1} parent=31 // pred_check_branch
          %2900 = sbr.rel (%p2898) target = $region52
        $region51: #{tpu_custom_call.1} parent=31 // pred_region
          %s2901 = smul.u32 16, %s25
        $region52: #{tpu_custom_call.1} parent=31 // pred_fallthru
          _
      $region32: #{tpu_custom_call.1} parent=5 // pred_fallthru
        _
      %p2902 = scmp.le.s32.totalorder 2, %s20
      // Predicated region
      $region53: #{tpu_custom_call.1} parent=5 // pred_check
        %p2903 = pneg %p2902
      $region54: #{tpu_custom_call.1} parent=5 // pred_check_branch
        %2905 = sbr.rel (%p2903) target = $region56
      $region55: #{tpu_custom_call.1} parent=5 // pred_region
        %s2906 = ssub.s32 %s20, 2
        // Predicated region
        $region57: #{tpu_custom_call.1} parent=55 // pred_check
          %p2907 = pneg %p127
        $region58: #{tpu_custom_call.1} parent=55 // pred_check_branch
          %2909 = sbr.rel (%p2907) target = $region60
        $region59: #{tpu_custom_call.1} parent=55 // pred_region
          %s2910 = sand.u32 %s112, 1
          %s2911 = scalar_lea.sflag [#allocation4], %s2910
          %s2912 = sand.u32 %s112, 1
          %s2913 = smul.addr %s2912, 128
          %s2914 = scalar_lea.vmem [#allocation8], %s2913
          %2915 = dma.done %s2911, 2048
        $region60: #{tpu_custom_call.1} parent=55 // pred_fallthru
          _
        // Predicated region
        $region61: #{tpu_custom_call.1} parent=55 // pred_check
          %p2916 = pneg %p153
        $region62: #{tpu_custom_call.1} parent=55 // pred_check_branch
          %2918 = sbr.rel (%p2916) target = $region64
        $region63: #{tpu_custom_call.1} parent=55 // pred_region
          %s2919 = smul.u32 16, %s26
          %p2920 = scmp.lt.s32.totalorder %s2919, 31
          %s2921 = scalar_select %p2920, %s2919, 31
          %s2922 = smul.addr %s2921, 8
          %s2923 = scalar_lea.vmem %s4, %s2922
        $region64: #{tpu_custom_call.1} parent=55 // pred_fallthru
          _
      $region56: #{tpu_custom_call.1} parent=5 // pred_fallthru
        _
    $region6: #{tpu_custom_call.1} parent=1 // loop_footer
      %s24 = sadd.s32 1, %s20
    $region7: #{tpu_custom_call.1} parent=1 // loop_footer_branch
      %19 = sbr.rel target = $region3
    $region8: #{tpu_custom_call.1} parent=1 // loop_exit
      _
    %2924 = vsyncpa [#allocation3], 1
    %s2925 = scalar_lea.sflag [#allocation3], 1
    %2926 = vsyncpa %s2925, 1
    %2927 = vsyncpa [#allocation6], 1
    %s2928 = scalar_lea.sflag [#allocation6], 1
    %2929 = vsyncpa %s2928, 1
    %2930 = vsyncpa [#allocation4], 1
    %s2931 = scalar_lea.sflag [#allocation4], 1
    %2932 = vsyncpa %s2931, 1

</llo_original>
